<compile_context>
chip_gen: v7x
topology: tpu7x:2x2x1
jax: 0.10.0
libtpu: 0.0.40
codegen_flags: <defaults>
</compile_context>

<pallas_src>
import jax
import jax.numpy as jnp
from jax.experimental import pallas as pl
from jax.experimental.pallas import tpu as pltpu

HIDDEN = 768      # BERT hidden size
FC1 = 512
FC2 = 256
NEG_SLOPE = 0.01  # nn.LeakyReLU default negative_slope
BIG_TILE = 512    # target batch tile (per-grid-step overhead amortization)
NEG_BIG = -1e30   # bias for padded class columns: never wins max, exp() -> 0
                  # (safe only while the log-softmax path stays f32 — it does;
                  #  in bf16 this would become -inf and s - lse could NaN)


def _round_up(x, m):
    return ((x + m - 1) // m) * m


def _head_kernel(x_ref, w1_ref, b1_ref, w2_ref, b2_ref, w3_ref, b3_ref, o_ref):
    """fc1 -> LeakyReLU -> fc2 -> LeakyReLU -> fc3 -> LogSoftmax(dim=1).

    x arrives f32 and is cast to bf16 in-kernel (MXU-native); weights are
    bf16; accumulation, bias add, LeakyReLU and log-softmax are f32.
    """
    x = x_ref[...].astype(jnp.bfloat16)                               # (tb, 768) bf16

    h1 = jnp.dot(x, w1_ref[...], preferred_element_type=jnp.float32) + b1_ref[...]
    h1 = jnp.where(h1 > 0, h1, NEG_SLOPE * h1)                        # LeakyReLU (f32)
    # dropout(0.2): identity in eval mode

    h2 = jnp.dot(h1.astype(jnp.bfloat16), w2_ref[...],
                 preferred_element_type=jnp.float32) + b2_ref[...]
    h2 = jnp.where(h2 > 0, h2, NEG_SLOPE * h2)                        # LeakyReLU (f32)
    # dropout(0.2): identity in eval mode

    logits = jnp.dot(h2.astype(jnp.bfloat16), w3_ref[...],
                     preferred_element_type=jnp.float32) + b3_ref[...]  # (tb, cls_pad)

    # Numerically-stable log-softmax over the (padded, lane-dense) class axis.
    # Padded columns carry bias NEG_BIG so they never win the max and their
    # exp() underflows to 0, leaving the normalizer exact for real classes.
    m = jnp.max(logits, axis=-1, keepdims=True)
    s = logits - m
    lse = jnp.log(jnp.sum(jnp.exp(s), axis=-1, keepdims=True))
    o_ref[...] = (s - lse).astype(o_ref.dtype)


def bert_arch_head(cls_hs, params):
    """Run the Pallas kernel for the classification head.

    cls_hs: (B, 768) f32 — the [CLS] hidden state from the BERT backbone.
    params: dict from init_params (bf16 weights, f32 biases, w3/b3 pre-padded
            along the class dim to a multiple of 128, plus the true `size`).
    Returns (B, size) f32 log-probabilities.
    """
    B = cls_hs.shape[0]
    size = params["size"]
    w3p, b3p = params["w3p"], params["b3p"]
    cls_pad = w3p.shape[1]

    # --- batch tiling ---------------------------------------------------
    # Big tile to amortize ~0.35 us/grid-step overhead, but capped so nb >= 2
    # when B permits (v7x dual-TC sharding of the "parallel" axis; the extra
    # step is negligible on single-TC v5e/v6e). tile_b is sublane-aligned (8).
    tile_b = max(8, min(BIG_TILE, _round_up(pl.cdiv(B, 2), 8)))
    nb = pl.cdiv(B, tile_b)          # ragged tail handled by Pallas masking

    def tiled(shape):
        return pl.BlockSpec(shape, lambda i: (i, 0))

    def resident(shape):
        return pl.BlockSpec(shape, lambda i: (0, 0))

    # --- advisory cost estimate so XLA can overlap the custom call -------
    flops = 2 * B * (HIDDEN * FC1 + FC1 * FC2 + FC2 * cls_pad)
    transcendentals = B * (cls_pad + 1)                       # exp + log
    bytes_accessed = (
        B * HIDDEN * 4                                        # x (f32 in)
        + (HIDDEN * FC1 + FC1 * FC2 + FC2 * cls_pad) * 2      # bf16 weights
        + (FC1 + FC2 + cls_pad) * 4                           # f32 biases
        + B * cls_pad * 4                                     # f32 output
    )

    out_full = pl.pallas_call(
        _head_kernel,
        out_shape=jax.ShapeDtypeStruct((B, cls_pad), jnp.float32),
        grid=(nb,),
        in_specs=[
            tiled((tile_b, HIDDEN)),
            resident((HIDDEN, FC1)), resident((1, FC1)),
            resident((FC1, FC2)),    resident((1, FC2)),
            resident((FC2, cls_pad)), resident((1, cls_pad)),
        ],
        out_specs=tiled((tile_b, cls_pad)),
        compiler_params=pltpu.CompilerParams(
            dimension_semantics=("parallel",)),
        cost_estimate=pl.CostEstimate(
            flops=flops,
            transcendentals=transcendentals,
            bytes_accessed=bytes_accessed),
    )(cls_hs, params["w1"], params["b1"], params["w2"], params["b2"], w3p, b3p)

    return out_full[:, :size]


def init_params(key, size):
    """Deterministic init matching nn.Linear's U(-1/sqrt(fan_in), 1/sqrt(fan_in)).

    Weights are bf16 (halves weight DMA; MXU-native), biases f32.  The fc3
    weight/bias are padded ONCE here along the class dim to round_up(size,128)
    so every call gets a lane-dense output store with no per-call padding ops.
    """
    ks = jax.random.split(key, 6)

    def lin(kw, kb, fan_in, fan_out):
        bound = 1.0 / jnp.sqrt(float(fan_in))
        w = jax.random.uniform(kw, (fan_in, fan_out), jnp.float32, -bound, bound)
        b = jax.random.uniform(kb, (1, fan_out), jnp.float32, -bound, bound)
        return w.astype(jnp.bfloat16), b

    w1, b1 = lin(ks[0], ks[1], HIDDEN, FC1)
    w2, b2 = lin(ks[2], ks[3], FC1, FC2)
    w3, b3 = lin(ks[4], ks[5], FC2, size)

    cls_pad = _round_up(size, 128)
    w3p = jnp.zeros((FC2, cls_pad), jnp.bfloat16).at[:, :size].set(w3)
    b3p = jnp.full((1, cls_pad), NEG_BIG, jnp.float32).at[:, :size].set(b3)
    return dict(w1=w1, b1=b1, w2=w2, b2=b2, w3p=w3p, b3p=b3p, size=size)


def fake_bert_cls(key, sent_id, mask, hidden=HIDDEN, vocab=30):
    # TODO(synk): the real pretrained BERT encoder is an external module passed
    # into __init__; replaced here by a deterministic embedding-table stand-in
    # that mimics `bert(sent_id, attention_mask=mask)[0][:, 0]`.
    emb = jax.random.normal(key, (vocab, hidden), jnp.float32) * 0.02
    hidden_states = emb[sent_id] * mask[..., None].astype(jnp.float32)  # (B,S,768)
    return hidden_states[:, 0]                                          # (B, 768)


if __name__ == "__main__":
    key = jax.random.PRNGKey(0)
    k_emb, k_ids, k_params = jax.random.split(key, 3)

    B, S, SIZE, VOCAB = 8, 8, 8, 30
    sent_id = jax.random.randint(k_ids, (B, S), 0, VOCAB)
    mask = jnp.ones((B, S), jnp.int32)

    cls_hs = fake_bert_cls(k_emb, sent_id, mask, vocab=VOCAB)   # (B, 768) glue
    params = init_params(k_params, SIZE)

    log_probs = bert_arch_head(cls_hs, params)
    log_probs = jax.block_until_ready(log_probs)

    assert log_probs.shape == (B, SIZE)
    assert bool(jnp.all(jnp.isfinite(log_probs)))
    # log-softmax rows must exponentiate-sum to 1
    row_sums = jnp.sum(jnp.exp(log_probs), axis=1)
    assert bool(jnp.all(jnp.abs(row_sums - 1.0) < 1e-4))

    print("KERNEL_OK")
</pallas_src>

<mosaic_0001>
module attributes {stable_mosaic.version = 11 : i64} {
  func.func @_head_kernel(%arg0: i32, %arg1: memref<8x768xf32, #tpu.memory_space<vmem>>, %arg2: memref<768x512xbf16, #tpu.memory_space<vmem>>, %arg3: memref<1x512xf32, #tpu.memory_space<vmem>>, %arg4: memref<512x256xbf16, #tpu.memory_space<vmem>>, %arg5: memref<1x256xf32, #tpu.memory_space<vmem>>, %arg6: memref<256x128xbf16, #tpu.memory_space<vmem>>, %arg7: memref<1x128xf32, #tpu.memory_space<vmem>>, %arg8: memref<8x128xf32, #tpu.memory_space<vmem>>) attributes {dimension_semantics = [#tpu.dimension_semantics<parallel>], iteration_bounds = array<i64: 1>, scalar_prefetch = 0 : i64, scratch_operands = 0 : i64, tpu.core_type = #tpu.core_type<tc>, window_params = [{transform_indices = @transform_0, window_bounds = array<i64: 8, 768>}, {pipeline_mode = #tpu.pipeline_mode<synchronous>, transform_indices = @transform_1, window_bounds = array<i64: 768, 512>}, {pipeline_mode = #tpu.pipeline_mode<synchronous>, transform_indices = @transform_2, window_bounds = array<i64: 1, 512>}, {pipeline_mode = #tpu.pipeline_mode<synchronous>, transform_indices = @transform_3, window_bounds = array<i64: 512, 256>}, {pipeline_mode = #tpu.pipeline_mode<synchronous>, transform_indices = @transform_4, window_bounds = array<i64: 1, 256>}, {pipeline_mode = #tpu.pipeline_mode<synchronous>, transform_indices = @transform_5, window_bounds = array<i64: 256, 128>}, {pipeline_mode = #tpu.pipeline_mode<synchronous>, transform_indices = @transform_6, window_bounds = array<i64: 1, 128>}, {transform_indices = @transform_7, window_bounds = array<i64: 8, 128>}]} {
    %c0 = arith.constant 0 : index
    %c0_0 = arith.constant 0 : index
    %0 = vector.load %arg1[%c0, %c0_0] : memref<8x768xf32, #tpu.memory_space<vmem>>, vector<8x768xf32>
    %1 = arith.truncf %0 : vector<8x768xf32> to vector<8x768xbf16>
    %c0_1 = arith.constant 0 : index
    %c0_2 = arith.constant 0 : index
    %2 = vector.load %arg2[%c0_1, %c0_2] : memref<768x512xbf16, #tpu.memory_space<vmem>>, vector<768x512xbf16>
    %cst = arith.constant dense<0.000000e+00> : vector<8x512xf32>
    %3 = tpu.matmul %1, %2, %cst {dimension_numbers = #tpu.dot_dimension_numbers<[1], [0], [0], [1], [0, 0, 1, 1], [], []>} : vector<8x768xbf16>, vector<768x512xbf16>, vector<8x512xf32> -> vector<8x512xf32>
    %c0_3 = arith.constant 0 : index
    %c0_4 = arith.constant 0 : index
    %4 = vector.load %arg3[%c0_3, %c0_4] : memref<1x512xf32, #tpu.memory_space<vmem>>, vector<1x512xf32>
    %5 = vector.broadcast %4 : vector<1x512xf32> to vector<8x512xf32>
    %6 = arith.addf %3, %5 : vector<8x512xf32>
    %cst_5 = arith.constant 0.000000e+00 : f32
    %7 = vector.broadcast %cst_5 : f32 to vector<8x512xf32>
    %8 = arith.cmpf ogt, %6, %7 : vector<8x512xf32>
    %cst_6 = arith.constant 0.00999999977 : f32
    %9 = vector.broadcast %cst_6 : f32 to vector<8x512xf32>
    %10 = arith.mulf %9, %6 : vector<8x512xf32>
    %11 = arith.select %8, %6, %10 : vector<8x512xi1>, vector<8x512xf32>
    %12 = arith.truncf %11 : vector<8x512xf32> to vector<8x512xbf16>
    %c0_7 = arith.constant 0 : index
    %c0_8 = arith.constant 0 : index
    %13 = vector.load %arg4[%c0_7, %c0_8] : memref<512x256xbf16, #tpu.memory_space<vmem>>, vector<512x256xbf16>
    %cst_9 = arith.constant dense<0.000000e+00> : vector<8x256xf32>
    %14 = tpu.matmul %12, %13, %cst_9 {dimension_numbers = #tpu.dot_dimension_numbers<[1], [0], [0], [1], [0, 0, 1, 1], [], []>} : vector<8x512xbf16>, vector<512x256xbf16>, vector<8x256xf32> -> vector<8x256xf32>
    %c0_10 = arith.constant 0 : index
    %c0_11 = arith.constant 0 : index
    %15 = vector.load %arg5[%c0_10, %c0_11] : memref<1x256xf32, #tpu.memory_space<vmem>>, vector<1x256xf32>
    %16 = vector.broadcast %15 : vector<1x256xf32> to vector<8x256xf32>
    %17 = arith.addf %14, %16 : vector<8x256xf32>
    %cst_12 = arith.constant 0.000000e+00 : f32
    %18 = vector.broadcast %cst_12 : f32 to vector<8x256xf32>
    %19 = arith.cmpf ogt, %17, %18 : vector<8x256xf32>
    %cst_13 = arith.constant 0.00999999977 : f32
    %20 = vector.broadcast %cst_13 : f32 to vector<8x256xf32>
    %21 = arith.mulf %20, %17 : vector<8x256xf32>
    %22 = arith.select %19, %17, %21 : vector<8x256xi1>, vector<8x256xf32>
    %23 = arith.truncf %22 : vector<8x256xf32> to vector<8x256xbf16>
    %c0_14 = arith.constant 0 : index
    %c0_15 = arith.constant 0 : index
    %24 = vector.load %arg6[%c0_14, %c0_15] : memref<256x128xbf16, #tpu.memory_space<vmem>>, vector<256x128xbf16>
    %cst_16 = arith.constant dense<0.000000e+00> : vector<8x128xf32>
    %25 = tpu.matmul %23, %24, %cst_16 {dimension_numbers = #tpu.dot_dimension_numbers<[1], [0], [0], [1], [0, 0, 1, 1], [], []>} : vector<8x256xbf16>, vector<256x128xbf16>, vector<8x128xf32> -> vector<8x128xf32>
    %c0_17 = arith.constant 0 : index
    %c0_18 = arith.constant 0 : index
    %26 = vector.load %arg7[%c0_17, %c0_18] : memref<1x128xf32, #tpu.memory_space<vmem>>, vector<1x128xf32>
    %27 = vector.broadcast %26 : vector<1x128xf32> to vector<8x128xf32>
    %28 = arith.addf %25, %27 : vector<8x128xf32>
    %cst_19 = arith.constant dense<0xFF800000> : vector<8xf32>
    %29 = vector.multi_reduction <maximumf>, %28, %cst_19 [1] : vector<8x128xf32> to vector<8xf32>
    %30 = vector.shape_cast %29 : vector<8xf32> to vector<8x1xf32>
    %31 = vector.broadcast %30 : vector<8x1xf32> to vector<8x128xf32>
    %32 = arith.subf %28, %31 : vector<8x128xf32>
    %33 = math.exp %32 : vector<8x128xf32>
    %cst_20 = arith.constant dense<0.000000e+00> : vector<8xf32>
    %34 = vector.multi_reduction <add>, %33, %cst_20 [1] : vector<8x128xf32> to vector<8xf32>
    %35 = vector.shape_cast %34 : vector<8xf32> to vector<8x1xf32>
    %36 = math.log %35 : vector<8x1xf32>
    %37 = vector.broadcast %36 : vector<8x1xf32> to vector<8x128xf32>
    %38 = arith.subf %32, %37 : vector<8x128xf32>
    %c0_21 = arith.constant 0 : index
    %c0_22 = arith.constant 0 : index
    %39 = vector.load %arg8[%c0_21, %c0_22] : memref<8x128xf32, #tpu.memory_space<vmem>>, vector<8x128xf32>
    tpu.vector_store %arg8[%c0_21, %c0_22], %38 {strides = array<i32>} : memref<8x128xf32, #tpu.memory_space<vmem>>, vector<8x128xf32>,
    return
  }
  func.func @transform_0(%arg0: i32) -> (i32, i32) {
    %c0_i32 = arith.constant 0 : i32
    %c0_i32_0 = arith.constant 0 : i32
    return %arg0, %c0_i32 : i32, i32
  }
  func.func @transform_1(%arg0: i32) -> (i32, i32) {
    %c0_i32 = arith.constant 0 : i32
    %c0_i32_0 = arith.constant 0 : i32
    %c0_i32_1 = arith.constant 0 : i32
    return %c0_i32, %c0_i32_0 : i32, i32
  }
  func.func @transform_2(%arg0: i32) -> (i32, i32) {
    %c0_i32 = arith.constant 0 : i32
    %c0_i32_0 = arith.constant 0 : i32
    %c0_i32_1 = arith.constant 0 : i32
    return %c0_i32, %c0_i32_0 : i32, i32
  }
  func.func @transform_3(%arg0: i32) -> (i32, i32) {
    %c0_i32 = arith.constant 0 : i32
    %c0_i32_0 = arith.constant 0 : i32
    %c0_i32_1 = arith.constant 0 : i32
    return %c0_i32, %c0_i32_0 : i32, i32
  }
  func.func @transform_4(%arg0: i32) -> (i32, i32) {
    %c0_i32 = arith.constant 0 : i32
    %c0_i32_0 = arith.constant 0 : i32
    %c0_i32_1 = arith.constant 0 : i32
    return %c0_i32, %c0_i32_0 : i32, i32
  }
  func.func @transform_5(%arg0: i32) -> (i32, i32) {
    %c0_i32 = arith.constant 0 : i32
    %c0_i32_0 = arith.constant 0 : i32
    %c0_i32_1 = arith.constant 0 : i32
    return %c0_i32, %c0_i32_0 : i32, i32
  }
  func.func @transform_6(%arg0: i32) -> (i32, i32) {
    %c0_i32 = arith.constant 0 : i32
    %c0_i32_0 = arith.constant 0 : i32
    %c0_i32_1 = arith.constant 0 : i32
    return %c0_i32, %c0_i32_0 : i32, i32
  }
  func.func @transform_7(%arg0: i32) -> (i32, i32) {
    %c0_i32 = arith.constant 0 : i32
    %c0_i32_0 = arith.constant 0 : i32
    return %arg0, %c0_i32 : i32, i32
  }
}

</mosaic_0001>

<llo_original>
// kernel: tpu_custom_call.1
$region0: #{tpu_custom_call.1}
  #allocation0 [shape = 'u32[]', space=smem, size = 0x4, offset = 0x4, fixed_abs, tag = 'smem constant byte address 0x4 - core index']
  #allocation1 [shape = 'u32[144,128]{1,0:T(1,128)}', space=vmem, size = 0x12000, scoped, tag = 'internal scratch']
  %s0 = inlined_call_operand.hbm [shape: f32[8,768], index: 0, kind: input, shape index: {}]
  %s1 = inlined_call_operand.hbm [shape: bf16[768,512], index: 1, kind: input, shape index: {}]
  %s2 = inlined_call_operand.vmem [shape: f32[1,512], index: 2, kind: input, shape index: {}]
  %s3 = inlined_call_operand.hbm [shape: bf16[512,256], index: 3, kind: input, shape index: {}]
  %s4 = inlined_call_operand.vmem [shape: f32[1,256], index: 4, kind: input, shape index: {}]
  %s5 = inlined_call_operand.hbm [shape: bf16[256,128], index: 5, kind: input, shape index: {}]
  %s6 = inlined_call_operand.vmem [shape: f32[1,128], index: 6, kind: input, shape index: {}]
  %s7 = inlined_call_operand.hbm [shape: f32[8,128], index: 7, kind: output, shape index: {}]
  %s8 = sld [smem:[#allocation0]]
  $region54: #{tpu_custom_call.1} parent=0
    _
  %s10 = ssub.s32 1, %s8
  %s11 = scalar_select 0, %s10, %s8
  $region1: #{tpu_custom_call.1} parent=0
    #allocation2 [shape = 'u8[24576]{0}', space=vmem, size = 0x6000, scoped, tag = 'input window, operand 0, single buffered']
    #allocation3 [shape = 's32[1]{0}', space=sflag, size = 0x4, scoped, tag = 'scoped memory for tpu_custom_call.1']
    #allocation4 [shape = 's32[1]{0}', space=sflag, size = 0x4, scoped, tag = 'scoped memory for tpu_custom_call.1']
    #allocation5 [shape = 'u8[786432]{0}', space=vmem, size = 0xc0000, scoped, tag = 'input window, operand 1, single buffered']
    #allocation6 [shape = 's32[1]{0}', space=sflag, size = 0x4, scoped, tag = 'scoped memory for tpu_custom_call.1']
    #allocation7 [shape = 'u8[262144]{0}', space=vmem, size = 0x40000, scoped, tag = 'input window, operand 3, single buffered']
    #allocation8 [shape = 'u8[65536]{0}', space=vmem, size = 0x10000, scoped, tag = 'input window, operand 5, single buffered']
    #allocation9 [shape = 's32[1]{0}', space=sflag, size = 0x4, scoped, tag = 'scoped memory for tpu_custom_call.1']
    #allocation10 [shape = 'u8[4096]{0}', space=vmem, size = 0x1000, scoped, tag = 'output window, operand 0, single buffered']
    %12 = vsyncpa [#allocation3], 0
    %13 = vsyncpa [#allocation6], 0
    %14 = vsyncpa [#allocation9], 0
    %15 = vsyncpa [#allocation4], 0
    // Predicated region
    $region2: #{tpu_custom_call.1} parent=1 // pred_check
      _
    $region3: #{tpu_custom_call.1} parent=1 // pred_check_branch
      %17 = sbr.rel (0) target = $region5
    $region4: #{tpu_custom_call.1} parent=1 // pred_region
      %s19 = ssub.s32 768, 768
      %20 = vsyncadd [#allocation3], %s19
      %s22 = sshll.u32 [#allocation2], 4
      %s23 = int_to_ptr.vmem [resolvable:$true] %s22
      %25 = dma.hbm_to_vmem [thread:$0]  %s0, 768, %s23, [#allocation3]
    $region5: #{tpu_custom_call.1} parent=1 // pred_fallthru
      _
    // Predicated region
    $region6: #{tpu_custom_call.1} parent=1 // pred_check
      _
    $region7: #{tpu_custom_call.1} parent=1 // pred_check_branch
      %27 = sbr.rel (0) target = $region9
    $region8: #{tpu_custom_call.1} parent=1 // pred_region
      %s29 = ssub.s32 24576, 24576
      %30 = vsyncadd [#allocation6], %s29
      %s31 = sshll.u32 [#allocation5], 4
      %s32 = int_to_ptr.vmem [resolvable:$true] %s31
      %37 = dma.hbm_to_vmem [thread:$0]  %s1, 24576, %s32, [#allocation6], 256, 256, 16
    $region9: #{tpu_custom_call.1} parent=1 // pred_fallthru
      _
    // Predicated region
    $region10: #{tpu_custom_call.1} parent=1 // pred_check
      _
    $region11: #{tpu_custom_call.1} parent=1 // pred_check_branch
      %39 = sbr.rel (0) target = $region13
    $region12: #{tpu_custom_call.1} parent=1 // pred_region
      _
    $region13: #{tpu_custom_call.1} parent=1 // pred_fallthru
      _
    // Predicated region
    $region14: #{tpu_custom_call.1} parent=1 // pred_check
      _
    $region15: #{tpu_custom_call.1} parent=1 // pred_check_branch
      %41 = sbr.rel (0) target = $region17
    $region16: #{tpu_custom_call.1} parent=1 // pred_region
      %s43 = ssub.s32 8192, 8192
      %44 = vsyncadd [#allocation6], %s43
      %s45 = sshll.u32 [#allocation7], 4
      %s46 = int_to_ptr.vmem [resolvable:$true] %s45
      %51 = dma.hbm_to_vmem [thread:$0]  %s3, 8192, %s46, [#allocation6], 128, 128, 8
    $region17: #{tpu_custom_call.1} parent=1 // pred_fallthru
      _
    // Predicated region
    $region18: #{tpu_custom_call.1} parent=1 // pred_check
      _
    $region19: #{tpu_custom_call.1} parent=1 // pred_check_branch
      %53 = sbr.rel (0) target = $region21
    $region20: #{tpu_custom_call.1} parent=1 // pred_region
      _
    $region21: #{tpu_custom_call.1} parent=1 // pred_fallthru
      _
    // Predicated region
    $region22: #{tpu_custom_call.1} parent=1 // pred_check
      _
    $region23: #{tpu_custom_call.1} parent=1 // pred_check_branch
      %55 = sbr.rel (0) target = $region25
    $region24: #{tpu_custom_call.1} parent=1 // pred_region
      %s57 = ssub.s32 2048, 2048
      %58 = vsyncadd [#allocation9], %s57
      %s59 = sshll.u32 [#allocation8], 4
      %s60 = int_to_ptr.vmem [resolvable:$true] %s59
      %65 = dma.hbm_to_vmem [thread:$0]  %s5, 2048, %s60, [#allocation9], 64, 64, 4
    $region25: #{tpu_custom_call.1} parent=1 // pred_fallthru
      _
    // Predicated region
    $region26: #{tpu_custom_call.1} parent=1 // pred_check
      _
    $region27: #{tpu_custom_call.1} parent=1 // pred_check_branch
      %67 = sbr.rel (0) target = $region29
    $region28: #{tpu_custom_call.1} parent=1 // pred_region
      _
    $region29: #{tpu_custom_call.1} parent=1 // pred_fallthru
      _
    // Predicated region
    $region30: #{tpu_custom_call.1} parent=1 // pred_check
      _
    $region31: #{tpu_custom_call.1} parent=1 // pred_check_branch
      %69 = sbr.rel (0) target = $region33
    $region32: #{tpu_custom_call.1} parent=1 // pred_region
      %70 = dma.done [#allocation3], 768
    $region33: #{tpu_custom_call.1} parent=1 // pred_fallthru
      _
    // Predicated region
    $region34: #{tpu_custom_call.1} parent=1 // pred_check
      _
    $region35: #{tpu_custom_call.1} parent=1 // pred_check_branch
      %72 = sbr.rel (0) target = $region37
    $region36: #{tpu_custom_call.1} parent=1 // pred_region
      %73 = dma.done [#allocation6], 24576
    $region37: #{tpu_custom_call.1} parent=1 // pred_fallthru
      _
    // Predicated region
    $region38: #{tpu_custom_call.1} parent=1 // pred_check
      _
    $region39: #{tpu_custom_call.1} parent=1 // pred_check_branch
      %75 = sbr.rel (0) target = $region41
    $region40: #{tpu_custom_call.1} parent=1 // pred_region
      %76 = dma.done [#allocation6], 8192
    $region41: #{tpu_custom_call.1} parent=1 // pred_fallthru
      _
    // Predicated region
    $region42: #{tpu_custom_call.1} parent=1 // pred_check
      _
    $region43: #{tpu_custom_call.1} parent=1 // pred_check_branch
      %78 = sbr.rel (0) target = $region45
    $region44: #{tpu_custom_call.1} parent=1 // pred_region
      %79 = dma.done [#allocation9], 2048
    $region45: #{tpu_custom_call.1} parent=1 // pred_fallthru
      _
    %v81 = vld [vmem:[#allocation2] sm:$0xff]
    %v82 = vld [vmem:[#allocation2 + $0x8] sm:$0xff]
    %v83 = vld [vmem:[#allocation2 + $0x10] sm:$0xff]
    %v84 = vld [vmem:[#allocation2 + $0x18] sm:$0xff]
    %v85 = vld [vmem:[#allocation2 + $0x20] sm:$0xff]
    %v86 = vld [vmem:[#allocation2 + $0x28] sm:$0xff]
    %v87 = vpack.c.bf16 %v81, %v81
    %v88 = vpack.c.bf16 %v82, %v82
    %v89 = vpack.c.bf16 %v83, %v83
    %v90 = vpack.c.bf16 %v84, %v84
    %v91 = vpack.c.bf16 %v85, %v85
    %v92 = vpack.c.bf16 %v86, %v86
    %v93 = vld [vmem:[#allocation5] sm:$0xff]
    %v94 = vld [vmem:[#allocation5 + $0x8] sm:$0xff]
    %v95 = vld [vmem:[#allocation5 + $0x10] sm:$0xff]
    %v96 = vld [vmem:[#allocation5 + $0x18] sm:$0xff]
    %v97 = vld [vmem:[#allocation5 + $0x20] sm:$0xff]
    %v98 = vld [vmem:[#allocation5 + $0x28] sm:$0xff]
    %v99 = vld [vmem:[#allocation5 + $0x30] sm:$0xff]
    %v100 = vld [vmem:[#allocation5 + $0x38] sm:$0xff]
    %v101 = vld [vmem:[#allocation5 + $0x40] sm:$0xff]
    %v102 = vld [vmem:[#allocation5 + $0x48] sm:$0xff]
    %v103 = vld [vmem:[#allocation5 + $0x50] sm:$0xff]
    %v104 = vld [vmem:[#allocation5 + $0x58] sm:$0xff]
    %v105 = vld [vmem:[#allocation5 + $0x60] sm:$0xff]
    %v106 = vld [vmem:[#allocation5 + $0x68] sm:$0xff]
    %v107 = vld [vmem:[#allocation5 + $0x70] sm:$0xff]
    %v108 = vld [vmem:[#allocation5 + $0x78] sm:$0xff]
    %v109 = vld [vmem:[#allocation5 + $0x80] sm:$0xff]
    %v110 = vld [vmem:[#allocation5 + $0x88] sm:$0xff]
    %v111 = vld [vmem:[#allocation5 + $0x90] sm:$0xff]
    %v112 = vld [vmem:[#allocation5 + $0x98] sm:$0xff]
    %v113 = vld [vmem:[#allocation5 + $0xa0] sm:$0xff]
    %v114 = vld [vmem:[#allocation5 + $0xa8] sm:$0xff]
    %v115 = vld [vmem:[#allocation5 + $0xb0] sm:$0xff]
    %v116 = vld [vmem:[#allocation5 + $0xb8] sm:$0xff]
    %v117 = vld [vmem:[#allocation5 + $0xc0] sm:$0xff]
    %v118 = vld [vmem:[#allocation5 + $0xc8] sm:$0xff]
    %v119 = vld [vmem:[#allocation5 + $0xd0] sm:$0xff]
    %v120 = vld [vmem:[#allocation5 + $0xd8] sm:$0xff]
    %v121 = vld [vmem:[#allocation5 + $0xe0] sm:$0xff]
    %v122 = vld [vmem:[#allocation5 + $0xe8] sm:$0xff]
    %v123 = vld [vmem:[#allocation5 + $0xf0] sm:$0xff]
    %v124 = vld [vmem:[#allocation5 + $0xf8] sm:$0xff]
    %v125 = vld [vmem:[#allocation5 + $0x100] sm:$0xff]
    %v126 = vld [vmem:[#allocation5 + $0x108] sm:$0xff]
    %v127 = vld [vmem:[#allocation5 + $0x110] sm:$0xff]
    %v128 = vld [vmem:[#allocation5 + $0x118] sm:$0xff]
    %v129 = vld [vmem:[#allocation5 + $0x120] sm:$0xff]
    %v130 = vld [vmem:[#allocation5 + $0x128] sm:$0xff]
    %v131 = vld [vmem:[#allocation5 + $0x130] sm:$0xff]
    %v132 = vld [vmem:[#allocation5 + $0x138] sm:$0xff]
    %v133 = vld [vmem:[#allocation5 + $0x140] sm:$0xff]
    %v134 = vld [vmem:[#allocation5 + $0x148] sm:$0xff]
    %v135 = vld [vmem:[#allocation5 + $0x150] sm:$0xff]
    %v136 = vld [vmem:[#allocation5 + $0x158] sm:$0xff]
    %v137 = vld [vmem:[#allocation5 + $0x160] sm:$0xff]
    %v138 = vld [vmem:[#allocation5 + $0x168] sm:$0xff]
    %v139 = vld [vmem:[#allocation5 + $0x170] sm:$0xff]
    %v140 = vld [vmem:[#allocation5 + $0x178] sm:$0xff]
    %v141 = vld [vmem:[#allocation5 + $0x180] sm:$0xff]
    %v142 = vld [vmem:[#allocation5 + $0x188] sm:$0xff]
    %v143 = vld [vmem:[#allocation5 + $0x190] sm:$0xff]
    %v144 = vld [vmem:[#allocation5 + $0x198] sm:$0xff]
    %v145 = vld [vmem:[#allocation5 + $0x1a0] sm:$0xff]
    %v146 = vld [vmem:[#allocation5 + $0x1a8] sm:$0xff]
    %v147 = vld [vmem:[#allocation5 + $0x1b0] sm:$0xff]
    %v148 = vld [vmem:[#allocation5 + $0x1b8] sm:$0xff]
    %v149 = vld [vmem:[#allocation5 + $0x1c0] sm:$0xff]
    %v150 = vld [vmem:[#allocation5 + $0x1c8] sm:$0xff]
    %v151 = vld [vmem:[#allocation5 + $0x1d0] sm:$0xff]
    %v152 = vld [vmem:[#allocation5 + $0x1d8] sm:$0xff]
    %v153 = vld [vmem:[#allocation5 + $0x1e0] sm:$0xff]
    %v154 = vld [vmem:[#allocation5 + $0x1e8] sm:$0xff]
    %v155 = vld [vmem:[#allocation5 + $0x1f0] sm:$0xff]
    %v156 = vld [vmem:[#allocation5 + $0x1f8] sm:$0xff]
    %v157 = vld [vmem:[#allocation5 + $0x200] sm:$0xff]
    %v158 = vld [vmem:[#allocation5 + $0x208] sm:$0xff]
    %v159 = vld [vmem:[#allocation5 + $0x210] sm:$0xff]
    %v160 = vld [vmem:[#allocation5 + $0x218] sm:$0xff]
    %v161 = vld [vmem:[#allocation5 + $0x220] sm:$0xff]
    %v162 = vld [vmem:[#allocation5 + $0x228] sm:$0xff]
    %v163 = vld [vmem:[#allocation5 + $0x230] sm:$0xff]
    %v164 = vld [vmem:[#allocation5 + $0x238] sm:$0xff]
    %v165 = vld [vmem:[#allocation5 + $0x240] sm:$0xff]
    %v166 = vld [vmem:[#allocation5 + $0x248] sm:$0xff]
    %v167 = vld [vmem:[#allocation5 + $0x250] sm:$0xff]
    %v168 = vld [vmem:[#allocation5 + $0x258] sm:$0xff]
    %v169 = vld [vmem:[#allocation5 + $0x260] sm:$0xff]
    %v170 = vld [vmem:[#allocation5 + $0x268] sm:$0xff]
    %v171 = vld [vmem:[#allocation5 + $0x270] sm:$0xff]
    %v172 = vld [vmem:[#allocation5 + $0x278] sm:$0xff]
    %v173 = vld [vmem:[#allocation5 + $0x280] sm:$0xff]
    %v174 = vld [vmem:[#allocation5 + $0x288] sm:$0xff]
    %v175 = vld [vmem:[#allocation5 + $0x290] sm:$0xff]
    %v176 = vld [vmem:[#allocation5 + $0x298] sm:$0xff]
    %v177 = vld [vmem:[#allocation5 + $0x2a0] sm:$0xff]
    %v178 = vld [vmem:[#allocation5 + $0x2a8] sm:$0xff]
    %v179 = vld [vmem:[#allocation5 + $0x2b0] sm:$0xff]
    %v180 = vld [vmem:[#allocation5 + $0x2b8] sm:$0xff]
    %v181 = vld [vmem:[#allocation5 + $0x2c0] sm:$0xff]
    %v182 = vld [vmem:[#allocation5 + $0x2c8] sm:$0xff]
    %v183 = vld [vmem:[#allocation5 + $0x2d0] sm:$0xff]
    %v184 = vld [vmem:[#allocation5 + $0x2d8] sm:$0xff]
    %v185 = vld [vmem:[#allocation5 + $0x2e0] sm:$0xff]
    %v186 = vld [vmem:[#allocation5 + $0x2e8] sm:$0xff]
    %v187 = vld [vmem:[#allocation5 + $0x2f0] sm:$0xff]
    %v188 = vld [vmem:[#allocation5 + $0x2f8] sm:$0xff]
    %v189 = vld [vmem:[#allocation5 + $0x300] sm:$0xff]
    %v190 = vld [vmem:[#allocation5 + $0x308] sm:$0xff]
    %v191 = vld [vmem:[#allocation5 + $0x310] sm:$0xff]
    %v192 = vld [vmem:[#allocation5 + $0x318] sm:$0xff]
    %v193 = vld [vmem:[#allocation5 + $0x320] sm:$0xff]
    %v194 = vld [vmem:[#allocation5 + $0x328] sm:$0xff]
    %v195 = vld [vmem:[#allocation5 + $0x330] sm:$0xff]
    %v196 = vld [vmem:[#allocation5 + $0x338] sm:$0xff]
    %v197 = vld [vmem:[#allocation5 + $0x340] sm:$0xff]
    %v198 = vld [vmem:[#allocation5 + $0x348] sm:$0xff]
    %v199 = vld [vmem:[#allocation5 + $0x350] sm:$0xff]
    %v200 = vld [vmem:[#allocation5 + $0x358] sm:$0xff]
    %v201 = vld [vmem:[#allocation5 + $0x360] sm:$0xff]
    %v202 = vld [vmem:[#allocation5 + $0x368] sm:$0xff]
    %v203 = vld [vmem:[#allocation5 + $0x370] sm:$0xff]
    %v204 = vld [vmem:[#allocation5 + $0x378] sm:$0xff]
    %v205 = vld [vmem:[#allocation5 + $0x380] sm:$0xff]
    %v206 = vld [vmem:[#allocation5 + $0x388] sm:$0xff]
    %v207 = vld [vmem:[#allocation5 + $0x390] sm:$0xff]
    %v208 = vld [vmem:[#allocation5 + $0x398] sm:$0xff]
    %v209 = vld [vmem:[#allocation5 + $0x3a0] sm:$0xff]
    %v210 = vld [vmem:[#allocation5 + $0x3a8] sm:$0xff]
    %v211 = vld [vmem:[#allocation5 + $0x3b0] sm:$0xff]
    %v212 = vld [vmem:[#allocation5 + $0x3b8] sm:$0xff]
    %v213 = vld [vmem:[#allocation5 + $0x3c0] sm:$0xff]
    %v214 = vld [vmem:[#allocation5 + $0x3c8] sm:$0xff]
    %v215 = vld [vmem:[#allocation5 + $0x3d0] sm:$0xff]
    %v216 = vld [vmem:[#allocation5 + $0x3d8] sm:$0xff]
    %v217 = vld [vmem:[#allocation5 + $0x3e0] sm:$0xff]
    %v218 = vld [vmem:[#allocation5 + $0x3e8] sm:$0xff]
    %v219 = vld [vmem:[#allocation5 + $0x3f0] sm:$0xff]
    %v220 = vld [vmem:[#allocation5 + $0x3f8] sm:$0xff]
    %v221 = vld [vmem:[#allocation5 + $0x400] sm:$0xff]
    %v222 = vld [vmem:[#allocation5 + $0x408] sm:$0xff]
    %v223 = vld [vmem:[#allocation5 + $0x410] sm:$0xff]
    %v224 = vld [vmem:[#allocation5 + $0x418] sm:$0xff]
    %v225 = vld [vmem:[#allocation5 + $0x420] sm:$0xff]
    %v226 = vld [vmem:[#allocation5 + $0x428] sm:$0xff]
    %v227 = vld [vmem:[#allocation5 + $0x430] sm:$0xff]
    %v228 = vld [vmem:[#allocation5 + $0x438] sm:$0xff]
    %v229 = vld [vmem:[#allocation5 + $0x440] sm:$0xff]
    %v230 = vld [vmem:[#allocation5 + $0x448] sm:$0xff]
    %v231 = vld [vmem:[#allocation5 + $0x450] sm:$0xff]
    %v232 = vld [vmem:[#allocation5 + $0x458] sm:$0xff]
    %v233 = vld [vmem:[#allocation5 + $0x460] sm:$0xff]
    %v234 = vld [vmem:[#allocation5 + $0x468] sm:$0xff]
    %v235 = vld [vmem:[#allocation5 + $0x470] sm:$0xff]
    %v236 = vld [vmem:[#allocation5 + $0x478] sm:$0xff]
    %v237 = vld [vmem:[#allocation5 + $0x480] sm:$0xff]
    %v238 = vld [vmem:[#allocation5 + $0x488] sm:$0xff]
    %v239 = vld [vmem:[#allocation5 + $0x490] sm:$0xff]
    %v240 = vld [vmem:[#allocation5 + $0x498] sm:$0xff]
    %v241 = vld [vmem:[#allocation5 + $0x4a0] sm:$0xff]
    %v242 = vld [vmem:[#allocation5 + $0x4a8] sm:$0xff]
    %v243 = vld [vmem:[#allocation5 + $0x4b0] sm:$0xff]
    %v244 = vld [vmem:[#allocation5 + $0x4b8] sm:$0xff]
    %v245 = vld [vmem:[#allocation5 + $0x4c0] sm:$0xff]
    %v246 = vld [vmem:[#allocation5 + $0x4c8] sm:$0xff]
    %v247 = vld [vmem:[#allocation5 + $0x4d0] sm:$0xff]
    %v248 = vld [vmem:[#allocation5 + $0x4d8] sm:$0xff]
    %v249 = vld [vmem:[#allocation5 + $0x4e0] sm:$0xff]
    %v250 = vld [vmem:[#allocation5 + $0x4e8] sm:$0xff]
    %v251 = vld [vmem:[#allocation5 + $0x4f0] sm:$0xff]
    %v252 = vld [vmem:[#allocation5 + $0x4f8] sm:$0xff]
    %v253 = vld [vmem:[#allocation5 + $0x500] sm:$0xff]
    %v254 = vld [vmem:[#allocation5 + $0x508] sm:$0xff]
    %v255 = vld [vmem:[#allocation5 + $0x510] sm:$0xff]
    %v256 = vld [vmem:[#allocation5 + $0x518] sm:$0xff]
    %v257 = vld [vmem:[#allocation5 + $0x520] sm:$0xff]
    %v258 = vld [vmem:[#allocation5 + $0x528] sm:$0xff]
    %v259 = vld [vmem:[#allocation5 + $0x530] sm:$0xff]
    %v260 = vld [vmem:[#allocation5 + $0x538] sm:$0xff]
    %v261 = vld [vmem:[#allocation5 + $0x540] sm:$0xff]
    %v262 = vld [vmem:[#allocation5 + $0x548] sm:$0xff]
    %v263 = vld [vmem:[#allocation5 + $0x550] sm:$0xff]
    %v264 = vld [vmem:[#allocation5 + $0x558] sm:$0xff]
    %v265 = vld [vmem:[#allocation5 + $0x560] sm:$0xff]
    %v266 = vld [vmem:[#allocation5 + $0x568] sm:$0xff]
    %v267 = vld [vmem:[#allocation5 + $0x570] sm:$0xff]
    %v268 = vld [vmem:[#allocation5 + $0x578] sm:$0xff]
    %v269 = vld [vmem:[#allocation5 + $0x580] sm:$0xff]
    %v270 = vld [vmem:[#allocation5 + $0x588] sm:$0xff]
    %v271 = vld [vmem:[#allocation5 + $0x590] sm:$0xff]
    %v272 = vld [vmem:[#allocation5 + $0x598] sm:$0xff]
    %v273 = vld [vmem:[#allocation5 + $0x5a0] sm:$0xff]
    %v274 = vld [vmem:[#allocation5 + $0x5a8] sm:$0xff]
    %v275 = vld [vmem:[#allocation5 + $0x5b0] sm:$0xff]
    %v276 = vld [vmem:[#allocation5 + $0x5b8] sm:$0xff]
    %v277 = vld [vmem:[#allocation5 + $0x5c0] sm:$0xff]
    %v278 = vld [vmem:[#allocation5 + $0x5c8] sm:$0xff]
    %v279 = vld [vmem:[#allocation5 + $0x5d0] sm:$0xff]
    %v280 = vld [vmem:[#allocation5 + $0x5d8] sm:$0xff]
    %v281 = vld [vmem:[#allocation5 + $0x5e0] sm:$0xff]
    %v282 = vld [vmem:[#allocation5 + $0x5e8] sm:$0xff]
    %v283 = vld [vmem:[#allocation5 + $0x5f0] sm:$0xff]
    %v284 = vld [vmem:[#allocation5 + $0x5f8] sm:$0xff]
    %v285 = vld [vmem:[%s2] sm:$0xf]
    %v287 = vlaneseq
    %v288 = vshrl.u32 %v287, 7
    %v289 = vsub.s32 0, %v288
    %v290 = vrot.slane %v285, %v289
    %v291 = vlaneseq
    %v292 = vshrl.u32 %v291, 7
    %v293 = vsub.s32 1, %v292
    %v294 = vrot.slane %v285, %v293
    %v295 = vlaneseq
    %v296 = vshrl.u32 %v295, 7
    %v297 = vsub.s32 2, %v296
    %v298 = vrot.slane %v285, %v297
    %v299 = vlaneseq
    %v300 = vshrl.u32 %v299, 7
    %v301 = vsub.s32 3, %v300
    %v302 = vrot.slane %v285, %v301
    %v499 = vunpack.c.l.b16 %v93
    %v500 = vunpack.c.h.b16 %v93
    %v501 = vunpack.c.l.b16 %v94
    %v502 = vunpack.c.h.b16 %v94
    %v503 = vunpack.c.l.b16 %v95
    %v504 = vunpack.c.h.b16 %v95
    %v505 = vunpack.c.l.b16 %v96
    %v506 = vunpack.c.h.b16 %v96
    %v507 = vunpack.c.l.b16 %v97
    %v508 = vunpack.c.h.b16 %v97
    %v509 = vunpack.c.l.b16 %v98
    %v510 = vunpack.c.h.b16 %v98
    %v511 = vunpack.c.l.b16 %v99
    %v512 = vunpack.c.h.b16 %v99
    %v513 = vunpack.c.l.b16 %v100
    %v514 = vunpack.c.h.b16 %v100
    %v515 = vunpack.c.l.b16 %v101
    %v516 = vunpack.c.h.b16 %v101
    %v517 = vunpack.c.l.b16 %v102
    %v518 = vunpack.c.h.b16 %v102
    %v519 = vunpack.c.l.b16 %v103
    %v520 = vunpack.c.h.b16 %v103
    %v521 = vunpack.c.l.b16 %v104
    %v522 = vunpack.c.h.b16 %v104
    %v523 = vunpack.c.l.b16 %v105
    %v524 = vunpack.c.h.b16 %v105
    %v525 = vunpack.c.l.b16 %v106
    %v526 = vunpack.c.h.b16 %v106
    %v527 = vunpack.c.l.b16 %v107
    %v528 = vunpack.c.h.b16 %v107
    %v529 = vunpack.c.l.b16 %v108
    %v530 = vunpack.c.h.b16 %v108
    %v531 = vunpack.c.l.b16 %v109
    %v532 = vunpack.c.h.b16 %v109
    %v533 = vunpack.c.l.b16 %v110
    %v534 = vunpack.c.h.b16 %v110
    %v535 = vunpack.c.l.b16 %v111
    %v536 = vunpack.c.h.b16 %v111
    %v537 = vunpack.c.l.b16 %v112
    %v538 = vunpack.c.h.b16 %v112
    %v539 = vunpack.c.l.b16 %v113
    %v540 = vunpack.c.h.b16 %v113
    %v541 = vunpack.c.l.b16 %v114
    %v542 = vunpack.c.h.b16 %v114
    %v543 = vunpack.c.l.b16 %v115
    %v544 = vunpack.c.h.b16 %v115
    %v545 = vunpack.c.l.b16 %v116
    %v546 = vunpack.c.h.b16 %v116
    %v547 = vunpack.c.l.b16 %v117
    %v548 = vunpack.c.h.b16 %v117
    %v549 = vunpack.c.l.b16 %v118
    %v550 = vunpack.c.h.b16 %v118
    %v551 = vunpack.c.l.b16 %v119
    %v552 = vunpack.c.h.b16 %v119
    %v553 = vunpack.c.l.b16 %v120
    %v554 = vunpack.c.h.b16 %v120
    %v555 = vunpack.c.l.b16 %v121
    %v556 = vunpack.c.h.b16 %v121
    %v557 = vunpack.c.l.b16 %v122
    %v558 = vunpack.c.h.b16 %v122
    %v559 = vunpack.c.l.b16 %v123
    %v560 = vunpack.c.h.b16 %v123
    %v561 = vunpack.c.l.b16 %v124
    %v562 = vunpack.c.h.b16 %v124
    %v563 = vunpack.c.l.b16 %v125
    %v564 = vunpack.c.h.b16 %v125
    %v565 = vunpack.c.l.b16 %v126
    %v566 = vunpack.c.h.b16 %v126
    %v567 = vunpack.c.l.b16 %v127
    %v568 = vunpack.c.h.b16 %v127
    %v569 = vunpack.c.l.b16 %v128
    %v570 = vunpack.c.h.b16 %v128
    %v571 = vunpack.c.l.b16 %v129
    %v572 = vunpack.c.h.b16 %v129
    %v573 = vunpack.c.l.b16 %v130
    %v574 = vunpack.c.h.b16 %v130
    %v575 = vunpack.c.l.b16 %v131
    %v576 = vunpack.c.h.b16 %v131
    %v577 = vunpack.c.l.b16 %v132
    %v578 = vunpack.c.h.b16 %v132
    %v579 = vunpack.c.l.b16 %v133
    %v580 = vunpack.c.h.b16 %v133
    %v581 = vunpack.c.l.b16 %v134
    %v582 = vunpack.c.h.b16 %v134
    %v583 = vunpack.c.l.b16 %v135
    %v584 = vunpack.c.h.b16 %v135
    %v585 = vunpack.c.l.b16 %v136
    %v586 = vunpack.c.h.b16 %v136
    %v587 = vunpack.c.l.b16 %v137
    %v588 = vunpack.c.h.b16 %v137
    %v589 = vunpack.c.l.b16 %v138
    %v590 = vunpack.c.h.b16 %v138
    %v591 = vunpack.c.l.b16 %v139
    %v592 = vunpack.c.h.b16 %v139
    %v593 = vunpack.c.l.b16 %v140
    %v594 = vunpack.c.h.b16 %v140
    %v595 = vunpack.c.l.b16 %v141
    %v596 = vunpack.c.h.b16 %v141
    %v597 = vunpack.c.l.b16 %v142
    %v598 = vunpack.c.h.b16 %v142
    %v599 = vunpack.c.l.b16 %v143
    %v600 = vunpack.c.h.b16 %v143
    %v601 = vunpack.c.l.b16 %v144
    %v602 = vunpack.c.h.b16 %v144
    %v603 = vunpack.c.l.b16 %v145
    %v604 = vunpack.c.h.b16 %v145
    %v605 = vunpack.c.l.b16 %v146
    %v606 = vunpack.c.h.b16 %v146
    %v607 = vunpack.c.l.b16 %v147
    %v608 = vunpack.c.h.b16 %v147
    %v609 = vunpack.c.l.b16 %v148
    %v610 = vunpack.c.h.b16 %v148
    %v611 = vunpack.c.l.b16 %v149
    %v612 = vunpack.c.h.b16 %v149
    %v613 = vunpack.c.l.b16 %v150
    %v614 = vunpack.c.h.b16 %v150
    %v615 = vunpack.c.l.b16 %v151
    %v616 = vunpack.c.h.b16 %v151
    %v617 = vunpack.c.l.b16 %v152
    %v618 = vunpack.c.h.b16 %v152
    %v619 = vunpack.c.l.b16 %v153
    %v620 = vunpack.c.h.b16 %v153
    %v621 = vunpack.c.l.b16 %v154
    %v622 = vunpack.c.h.b16 %v154
    %v623 = vunpack.c.l.b16 %v155
    %v624 = vunpack.c.h.b16 %v155
    %v625 = vunpack.c.l.b16 %v156
    %v626 = vunpack.c.h.b16 %v156
    %v627 = vunpack.c.l.b16 %v157
    %v628 = vunpack.c.h.b16 %v157
    %v629 = vunpack.c.l.b16 %v158
    %v630 = vunpack.c.h.b16 %v158
    %v631 = vunpack.c.l.b16 %v159
    %v632 = vunpack.c.h.b16 %v159
    %v633 = vunpack.c.l.b16 %v160
    %v634 = vunpack.c.h.b16 %v160
    %v635 = vunpack.c.l.b16 %v161
    %v636 = vunpack.c.h.b16 %v161
    %v637 = vunpack.c.l.b16 %v162
    %v638 = vunpack.c.h.b16 %v162
    %v639 = vunpack.c.l.b16 %v163
    %v640 = vunpack.c.h.b16 %v163
    %v641 = vunpack.c.l.b16 %v164
    %v642 = vunpack.c.h.b16 %v164
    %v643 = vunpack.c.l.b16 %v165
    %v644 = vunpack.c.h.b16 %v165
    %v645 = vunpack.c.l.b16 %v166
    %v646 = vunpack.c.h.b16 %v166
    %v647 = vunpack.c.l.b16 %v167
    %v648 = vunpack.c.h.b16 %v167
    %v649 = vunpack.c.l.b16 %v168
    %v650 = vunpack.c.h.b16 %v168
    %v651 = vunpack.c.l.b16 %v169
    %v652 = vunpack.c.h.b16 %v169
    %v653 = vunpack.c.l.b16 %v170
    %v654 = vunpack.c.h.b16 %v170
    %v655 = vunpack.c.l.b16 %v171
    %v656 = vunpack.c.h.b16 %v171
    %v657 = vunpack.c.l.b16 %v172
    %v658 = vunpack.c.h.b16 %v172
    %v659 = vunpack.c.l.b16 %v173
    %v660 = vunpack.c.h.b16 %v173
    %v661 = vunpack.c.l.b16 %v174
    %v662 = vunpack.c.h.b16 %v174
    %v663 = vunpack.c.l.b16 %v175
    %v664 = vunpack.c.h.b16 %v175
    %v665 = vunpack.c.l.b16 %v176
    %v666 = vunpack.c.h.b16 %v176
    %v667 = vunpack.c.l.b16 %v177
    %v668 = vunpack.c.h.b16 %v177
    %v669 = vunpack.c.l.b16 %v178
    %v670 = vunpack.c.h.b16 %v178
    %v671 = vunpack.c.l.b16 %v179
    %v672 = vunpack.c.h.b16 %v179
    %v673 = vunpack.c.l.b16 %v180
    %v674 = vunpack.c.h.b16 %v180
    %v675 = vunpack.c.l.b16 %v181
    %v676 = vunpack.c.h.b16 %v181
    %v677 = vunpack.c.l.b16 %v182
    %v678 = vunpack.c.h.b16 %v182
    %v679 = vunpack.c.l.b16 %v183
    %v680 = vunpack.c.h.b16 %v183
    %v681 = vunpack.c.l.b16 %v184
    %v682 = vunpack.c.h.b16 %v184
    %v683 = vunpack.c.l.b16 %v185
    %v684 = vunpack.c.h.b16 %v185
    %v685 = vunpack.c.l.b16 %v186
    %v686 = vunpack.c.h.b16 %v186
    %v687 = vunpack.c.l.b16 %v187
    %v688 = vunpack.c.h.b16 %v187
    %v689 = vunpack.c.l.b16 %v188
    %v690 = vunpack.c.h.b16 %v188
    %v691 = vunpack.c.l.b16 %v189
    %v692 = vunpack.c.h.b16 %v189
    %v693 = vunpack.c.l.b16 %v190
    %v694 = vunpack.c.h.b16 %v190
    %v695 = vunpack.c.l.b16 %v191
    %v696 = vunpack.c.h.b16 %v191
    %v697 = vunpack.c.l.b16 %v192
    %v698 = vunpack.c.h.b16 %v192
    %v699 = vunpack.c.l.b16 %v193
    %v700 = vunpack.c.h.b16 %v193
    %v701 = vunpack.c.l.b16 %v194
    %v702 = vunpack.c.h.b16 %v194
    %v703 = vunpack.c.l.b16 %v195
    %v704 = vunpack.c.h.b16 %v195
    %v705 = vunpack.c.l.b16 %v196
    %v706 = vunpack.c.h.b16 %v196
    %v707 = vunpack.c.l.b16 %v197
    %v708 = vunpack.c.h.b16 %v197
    %v709 = vunpack.c.l.b16 %v198
    %v710 = vunpack.c.h.b16 %v198
    %v711 = vunpack.c.l.b16 %v199
    %v712 = vunpack.c.h.b16 %v199
    %v713 = vunpack.c.l.b16 %v200
    %v714 = vunpack.c.h.b16 %v200
    %v715 = vunpack.c.l.b16 %v201
    %v716 = vunpack.c.h.b16 %v201
    %v717 = vunpack.c.l.b16 %v202
    %v718 = vunpack.c.h.b16 %v202
    %v719 = vunpack.c.l.b16 %v203
    %v720 = vunpack.c.h.b16 %v203
    %v721 = vunpack.c.l.b16 %v204
    %v722 = vunpack.c.h.b16 %v204
    %v723 = vunpack.c.l.b16 %v205
    %v724 = vunpack.c.h.b16 %v205
    %v725 = vunpack.c.l.b16 %v206
    %v726 = vunpack.c.h.b16 %v206
    %v727 = vunpack.c.l.b16 %v207
    %v728 = vunpack.c.h.b16 %v207
    %v729 = vunpack.c.l.b16 %v208
    %v730 = vunpack.c.h.b16 %v208
    %v731 = vunpack.c.l.b16 %v209
    %v732 = vunpack.c.h.b16 %v209
    %v733 = vunpack.c.l.b16 %v210
    %v734 = vunpack.c.h.b16 %v210
    %v735 = vunpack.c.l.b16 %v211
    %v736 = vunpack.c.h.b16 %v211
    %v737 = vunpack.c.l.b16 %v212
    %v738 = vunpack.c.h.b16 %v212
    %v739 = vunpack.c.l.b16 %v213
    %v740 = vunpack.c.h.b16 %v213
    %v741 = vunpack.c.l.b16 %v214
    %v742 = vunpack.c.h.b16 %v214
    %v743 = vunpack.c.l.b16 %v215
    %v744 = vunpack.c.h.b16 %v215
    %v745 = vunpack.c.l.b16 %v216
    %v746 = vunpack.c.h.b16 %v216
    %v747 = vunpack.c.l.b16 %v217
    %v748 = vunpack.c.h.b16 %v217
    %v749 = vunpack.c.l.b16 %v218
    %v750 = vunpack.c.h.b16 %v218
    %v751 = vunpack.c.l.b16 %v219
    %v752 = vunpack.c.h.b16 %v219
    %v753 = vunpack.c.l.b16 %v220
    %v754 = vunpack.c.h.b16 %v220
    %v755 = vunpack.c.l.b16 %v221
    %v756 = vunpack.c.h.b16 %v221
    %v757 = vunpack.c.l.b16 %v222
    %v758 = vunpack.c.h.b16 %v222
    %v759 = vunpack.c.l.b16 %v223
    %v760 = vunpack.c.h.b16 %v223
    %v761 = vunpack.c.l.b16 %v224
    %v762 = vunpack.c.h.b16 %v224
    %v763 = vunpack.c.l.b16 %v225
    %v764 = vunpack.c.h.b16 %v225
    %v765 = vunpack.c.l.b16 %v226
    %v766 = vunpack.c.h.b16 %v226
    %v767 = vunpack.c.l.b16 %v227
    %v768 = vunpack.c.h.b16 %v227
    %v769 = vunpack.c.l.b16 %v228
    %v770 = vunpack.c.h.b16 %v228
    %v771 = vunpack.c.l.b16 %v229
    %v772 = vunpack.c.h.b16 %v229
    %v773 = vunpack.c.l.b16 %v230
    %v774 = vunpack.c.h.b16 %v230
    %v775 = vunpack.c.l.b16 %v231
    %v776 = vunpack.c.h.b16 %v231
    %v777 = vunpack.c.l.b16 %v232
    %v778 = vunpack.c.h.b16 %v232
    %v779 = vunpack.c.l.b16 %v233
    %v780 = vunpack.c.h.b16 %v233
    %v781 = vunpack.c.l.b16 %v234
    %v782 = vunpack.c.h.b16 %v234
    %v783 = vunpack.c.l.b16 %v235
    %v784 = vunpack.c.h.b16 %v235
    %v785 = vunpack.c.l.b16 %v236
    %v786 = vunpack.c.h.b16 %v236
    %v787 = vunpack.c.l.b16 %v237
    %v788 = vunpack.c.h.b16 %v237
    %v789 = vunpack.c.l.b16 %v238
    %v790 = vunpack.c.h.b16 %v238
    %v791 = vunpack.c.l.b16 %v239
    %v792 = vunpack.c.h.b16 %v239
    %v793 = vunpack.c.l.b16 %v240
    %v794 = vunpack.c.h.b16 %v240
    %v795 = vunpack.c.l.b16 %v241
    %v796 = vunpack.c.h.b16 %v241
    %v797 = vunpack.c.l.b16 %v242
    %v798 = vunpack.c.h.b16 %v242
    %v799 = vunpack.c.l.b16 %v243
    %v800 = vunpack.c.h.b16 %v243
    %v801 = vunpack.c.l.b16 %v244
    %v802 = vunpack.c.h.b16 %v244
    %v803 = vunpack.c.l.b16 %v245
    %v804 = vunpack.c.h.b16 %v245
    %v805 = vunpack.c.l.b16 %v246
    %v806 = vunpack.c.h.b16 %v246
    %v807 = vunpack.c.l.b16 %v247
    %v808 = vunpack.c.h.b16 %v247
    %v809 = vunpack.c.l.b16 %v248
    %v810 = vunpack.c.h.b16 %v248
    %v811 = vunpack.c.l.b16 %v249
    %v812 = vunpack.c.h.b16 %v249
    %v813 = vunpack.c.l.b16 %v250
    %v814 = vunpack.c.h.b16 %v250
    %v815 = vunpack.c.l.b16 %v251
    %v816 = vunpack.c.h.b16 %v251
    %v817 = vunpack.c.l.b16 %v252
    %v818 = vunpack.c.h.b16 %v252
    %v819 = vunpack.c.l.b16 %v253
    %v820 = vunpack.c.h.b16 %v253
    %v821 = vunpack.c.l.b16 %v254
    %v822 = vunpack.c.h.b16 %v254
    %v823 = vunpack.c.l.b16 %v255
    %v824 = vunpack.c.h.b16 %v255
    %v825 = vunpack.c.l.b16 %v256
    %v826 = vunpack.c.h.b16 %v256
    %v827 = vunpack.c.l.b16 %v257
    %v828 = vunpack.c.h.b16 %v257
    %v829 = vunpack.c.l.b16 %v258
    %v830 = vunpack.c.h.b16 %v258
    %v831 = vunpack.c.l.b16 %v259
    %v832 = vunpack.c.h.b16 %v259
    %v833 = vunpack.c.l.b16 %v260
    %v834 = vunpack.c.h.b16 %v260
    %v835 = vunpack.c.l.b16 %v261
    %v836 = vunpack.c.h.b16 %v261
    %v837 = vunpack.c.l.b16 %v262
    %v838 = vunpack.c.h.b16 %v262
    %v839 = vunpack.c.l.b16 %v263
    %v840 = vunpack.c.h.b16 %v263
    %v841 = vunpack.c.l.b16 %v264
    %v842 = vunpack.c.h.b16 %v264
    %v843 = vunpack.c.l.b16 %v265
    %v844 = vunpack.c.h.b16 %v265
    %v845 = vunpack.c.l.b16 %v266
    %v846 = vunpack.c.h.b16 %v266
    %v847 = vunpack.c.l.b16 %v267
    %v848 = vunpack.c.h.b16 %v267
    %v849 = vunpack.c.l.b16 %v268
    %v850 = vunpack.c.h.b16 %v268
    %v851 = vunpack.c.l.b16 %v269
    %v852 = vunpack.c.h.b16 %v269
    %v853 = vunpack.c.l.b16 %v270
    %v854 = vunpack.c.h.b16 %v270
    %v855 = vunpack.c.l.b16 %v271
    %v856 = vunpack.c.h.b16 %v271
    %v857 = vunpack.c.l.b16 %v272
    %v858 = vunpack.c.h.b16 %v272
    %v859 = vunpack.c.l.b16 %v273
    %v860 = vunpack.c.h.b16 %v273
    %v861 = vunpack.c.l.b16 %v274
    %v862 = vunpack.c.h.b16 %v274
    %v863 = vunpack.c.l.b16 %v275
    %v864 = vunpack.c.h.b16 %v275
    %v865 = vunpack.c.l.b16 %v276
    %v866 = vunpack.c.h.b16 %v276
    %v867 = vunpack.c.l.b16 %v277
    %v868 = vunpack.c.h.b16 %v277
    %v869 = vunpack.c.l.b16 %v278
    %v870 = vunpack.c.h.b16 %v278
    %v871 = vunpack.c.l.b16 %v279
    %v872 = vunpack.c.h.b16 %v279
    %v873 = vunpack.c.l.b16 %v280
    %v874 = vunpack.c.h.b16 %v280
    %v875 = vunpack.c.l.b16 %v281
    %v876 = vunpack.c.h.b16 %v281
    %v877 = vunpack.c.l.b16 %v282
    %v878 = vunpack.c.h.b16 %v282
    %v879 = vunpack.c.l.b16 %v283
    %v880 = vunpack.c.h.b16 %v283
    %v881 = vunpack.c.l.b16 %v284
    %v882 = vunpack.c.h.b16 %v284
    %v883 = vpack.c.b16 %v503, %v499
    %v884 = vpack.c.b16 %v504, %v500
    %v885 = vpack.c.b16 %v505, %v501
    %v886 = vpack.c.b16 %v506, %v502
    %v887 = vpack.c.b16 %v511, %v507
    %v888 = vpack.c.b16 %v512, %v508
    %v889 = vpack.c.b16 %v513, %v509
    %v890 = vpack.c.b16 %v514, %v510
    %v891 = vpack.c.b16 %v519, %v515
    %v892 = vpack.c.b16 %v520, %v516
    %v893 = vpack.c.b16 %v521, %v517
    %v894 = vpack.c.b16 %v522, %v518
    %v895 = vpack.c.b16 %v527, %v523
    %v896 = vpack.c.b16 %v528, %v524
    %v897 = vpack.c.b16 %v529, %v525
    %v898 = vpack.c.b16 %v530, %v526
    %v899 = vpack.c.b16 %v535, %v531
    %v900 = vpack.c.b16 %v536, %v532
    %v901 = vpack.c.b16 %v537, %v533
    %v902 = vpack.c.b16 %v538, %v534
    %v903 = vpack.c.b16 %v543, %v539
    %v904 = vpack.c.b16 %v544, %v540
    %v905 = vpack.c.b16 %v545, %v541
    %v906 = vpack.c.b16 %v546, %v542
    %v907 = vpack.c.b16 %v551, %v547
    %v908 = vpack.c.b16 %v552, %v548
    %v909 = vpack.c.b16 %v553, %v549
    %v910 = vpack.c.b16 %v554, %v550
    %v911 = vpack.c.b16 %v559, %v555
    %v912 = vpack.c.b16 %v560, %v556
    %v913 = vpack.c.b16 %v561, %v557
    %v914 = vpack.c.b16 %v562, %v558
    %v915 = vpack.c.b16 %v567, %v563
    %v916 = vpack.c.b16 %v568, %v564
    %v917 = vpack.c.b16 %v569, %v565
    %v918 = vpack.c.b16 %v570, %v566
    %v919 = vpack.c.b16 %v575, %v571
    %v920 = vpack.c.b16 %v576, %v572
    %v921 = vpack.c.b16 %v577, %v573
    %v922 = vpack.c.b16 %v578, %v574
    %v923 = vpack.c.b16 %v583, %v579
    %v924 = vpack.c.b16 %v584, %v580
    %v925 = vpack.c.b16 %v585, %v581
    %v926 = vpack.c.b16 %v586, %v582
    %v927 = vpack.c.b16 %v591, %v587
    %v928 = vpack.c.b16 %v592, %v588
    %v929 = vpack.c.b16 %v593, %v589
    %v930 = vpack.c.b16 %v594, %v590
    %v931 = vpack.c.b16 %v599, %v595
    %v932 = vpack.c.b16 %v600, %v596
    %v933 = vpack.c.b16 %v601, %v597
    %v934 = vpack.c.b16 %v602, %v598
    %v935 = vpack.c.b16 %v607, %v603
    %v936 = vpack.c.b16 %v608, %v604
    %v937 = vpack.c.b16 %v609, %v605
    %v938 = vpack.c.b16 %v610, %v606
    %v939 = vpack.c.b16 %v615, %v611
    %v940 = vpack.c.b16 %v616, %v612
    %v941 = vpack.c.b16 %v617, %v613
    %v942 = vpack.c.b16 %v618, %v614
    %v943 = vpack.c.b16 %v623, %v619
    %v944 = vpack.c.b16 %v624, %v620
    %v945 = vpack.c.b16 %v625, %v621
    %v946 = vpack.c.b16 %v626, %v622
    %v947 = vpack.c.b16 %v631, %v627
    %v948 = vpack.c.b16 %v632, %v628
    %v949 = vpack.c.b16 %v633, %v629
    %v950 = vpack.c.b16 %v634, %v630
    %v951 = vpack.c.b16 %v639, %v635
    %v952 = vpack.c.b16 %v640, %v636
    %v953 = vpack.c.b16 %v641, %v637
    %v954 = vpack.c.b16 %v642, %v638
    %v955 = vpack.c.b16 %v647, %v643
    %v956 = vpack.c.b16 %v648, %v644
    %v957 = vpack.c.b16 %v649, %v645
    %v958 = vpack.c.b16 %v650, %v646
    %v959 = vpack.c.b16 %v655, %v651
    %v960 = vpack.c.b16 %v656, %v652
    %v961 = vpack.c.b16 %v657, %v653
    %v962 = vpack.c.b16 %v658, %v654
    %v963 = vpack.c.b16 %v663, %v659
    %v964 = vpack.c.b16 %v664, %v660
    %v965 = vpack.c.b16 %v665, %v661
    %v966 = vpack.c.b16 %v666, %v662
    %v967 = vpack.c.b16 %v671, %v667
    %v968 = vpack.c.b16 %v672, %v668
    %v969 = vpack.c.b16 %v673, %v669
    %v970 = vpack.c.b16 %v674, %v670
    %v971 = vpack.c.b16 %v679, %v675
    %v972 = vpack.c.b16 %v680, %v676
    %v973 = vpack.c.b16 %v681, %v677
    %v974 = vpack.c.b16 %v682, %v678
    %v975 = vpack.c.b16 %v687, %v683
    %v976 = vpack.c.b16 %v688, %v684
    %v977 = vpack.c.b16 %v689, %v685
    %v978 = vpack.c.b16 %v690, %v686
    %v979 = vpack.c.b16 %v695, %v691
    %v980 = vpack.c.b16 %v696, %v692
    %v981 = vpack.c.b16 %v697, %v693
    %v982 = vpack.c.b16 %v698, %v694
    %v983 = vpack.c.b16 %v703, %v699
    %v984 = vpack.c.b16 %v704, %v700
    %v985 = vpack.c.b16 %v705, %v701
    %v986 = vpack.c.b16 %v706, %v702
    %v987 = vpack.c.b16 %v711, %v707
    %v988 = vpack.c.b16 %v712, %v708
    %v989 = vpack.c.b16 %v713, %v709
    %v990 = vpack.c.b16 %v714, %v710
    %v991 = vpack.c.b16 %v719, %v715
    %v992 = vpack.c.b16 %v720, %v716
    %v993 = vpack.c.b16 %v721, %v717
    %v994 = vpack.c.b16 %v722, %v718
    %v995 = vpack.c.b16 %v727, %v723
    %v996 = vpack.c.b16 %v728, %v724
    %v997 = vpack.c.b16 %v729, %v725
    %v998 = vpack.c.b16 %v730, %v726
    %v999 = vpack.c.b16 %v735, %v731
    %v1000 = vpack.c.b16 %v736, %v732
    %v1001 = vpack.c.b16 %v737, %v733
    %v1002 = vpack.c.b16 %v738, %v734
    %v1003 = vpack.c.b16 %v743, %v739
    %v1004 = vpack.c.b16 %v744, %v740
    %v1005 = vpack.c.b16 %v745, %v741
    %v1006 = vpack.c.b16 %v746, %v742
    %v1007 = vpack.c.b16 %v751, %v747
    %v1008 = vpack.c.b16 %v752, %v748
    %v1009 = vpack.c.b16 %v753, %v749
    %v1010 = vpack.c.b16 %v754, %v750
    %v1011 = vpack.c.b16 %v759, %v755
    %v1012 = vpack.c.b16 %v760, %v756
    %v1013 = vpack.c.b16 %v761, %v757
    %v1014 = vpack.c.b16 %v762, %v758
    %v1015 = vpack.c.b16 %v767, %v763
    %v1016 = vpack.c.b16 %v768, %v764
    %v1017 = vpack.c.b16 %v769, %v765
    %v1018 = vpack.c.b16 %v770, %v766
    %v1019 = vpack.c.b16 %v775, %v771
    %v1020 = vpack.c.b16 %v776, %v772
    %v1021 = vpack.c.b16 %v777, %v773
    %v1022 = vpack.c.b16 %v778, %v774
    %v1023 = vpack.c.b16 %v783, %v779
    %v1024 = vpack.c.b16 %v784, %v780
    %v1025 = vpack.c.b16 %v785, %v781
    %v1026 = vpack.c.b16 %v786, %v782
    %v1027 = vpack.c.b16 %v791, %v787
    %v1028 = vpack.c.b16 %v792, %v788
    %v1029 = vpack.c.b16 %v793, %v789
    %v1030 = vpack.c.b16 %v794, %v790
    %v1031 = vpack.c.b16 %v799, %v795
    %v1032 = vpack.c.b16 %v800, %v796
    %v1033 = vpack.c.b16 %v801, %v797
    %v1034 = vpack.c.b16 %v802, %v798
    %v1035 = vpack.c.b16 %v807, %v803
    %v1036 = vpack.c.b16 %v808, %v804
    %v1037 = vpack.c.b16 %v809, %v805
    %v1038 = vpack.c.b16 %v810, %v806
    %v1039 = vpack.c.b16 %v815, %v811
    %v1040 = vpack.c.b16 %v816, %v812
    %v1041 = vpack.c.b16 %v817, %v813
    %v1042 = vpack.c.b16 %v818, %v814
    %v1043 = vpack.c.b16 %v823, %v819
    %v1044 = vpack.c.b16 %v824, %v820
    %v1045 = vpack.c.b16 %v825, %v821
    %v1046 = vpack.c.b16 %v826, %v822
    %v1047 = vpack.c.b16 %v831, %v827
    %v1048 = vpack.c.b16 %v832, %v828
    %v1049 = vpack.c.b16 %v833, %v829
    %v1050 = vpack.c.b16 %v834, %v830
    %v1051 = vpack.c.b16 %v839, %v835
    %v1052 = vpack.c.b16 %v840, %v836
    %v1053 = vpack.c.b16 %v841, %v837
    %v1054 = vpack.c.b16 %v842, %v838
    %v1055 = vpack.c.b16 %v847, %v843
    %v1056 = vpack.c.b16 %v848, %v844
    %v1057 = vpack.c.b16 %v849, %v845
    %v1058 = vpack.c.b16 %v850, %v846
    %v1059 = vpack.c.b16 %v855, %v851
    %v1060 = vpack.c.b16 %v856, %v852
    %v1061 = vpack.c.b16 %v857, %v853
    %v1062 = vpack.c.b16 %v858, %v854
    %v1063 = vpack.c.b16 %v863, %v859
    %v1064 = vpack.c.b16 %v864, %v860
    %v1065 = vpack.c.b16 %v865, %v861
    %v1066 = vpack.c.b16 %v866, %v862
    %v1067 = vpack.c.b16 %v871, %v867
    %v1068 = vpack.c.b16 %v872, %v868
    %v1069 = vpack.c.b16 %v873, %v869
    %v1070 = vpack.c.b16 %v874, %v870
    %v1071 = vpack.c.b16 %v879, %v875
    %v1072 = vpack.c.b16 %v880, %v876
    %v1073 = vpack.c.b16 %v881, %v877
    %v1074 = vpack.c.b16 %v882, %v878
    %1267 = vmatprep.subr.bf16.mxu0 %v884
    %1268 = vmatpush1.bf16.msra.mxu0 %v883
    %1269 = vmatprep.subr.bf16.mxu0 %v888
    %1270 = vmatpush1.bf16.msra.mxu0 %v887
    %1271 = vmatprep.subr.bf16.mxu0 %v892
    %1272 = vmatpush1.bf16.msra.mxu0 %v891
    %1273 = vmatprep.subr.bf16.mxu0 %v896
    %1274 = vmatpush1.bf16.msra.mxu0 %v895
    %1275 = vmatprep.subr.bf16.mxu0 %v900
    %1276 = vmatpush1.bf16.msra.mxu0 %v899
    %1277 = vmatprep.subr.bf16.mxu0 %v904
    %1278 = vmatpush1.bf16.msra.mxu0 %v903
    %1279 = vmatprep.subr.bf16.mxu0 %v908
    %1280 = vmatpush1.bf16.msra.mxu0 %v907
    %1281 = vmatprep.subr.bf16.mxu0 %v912
    %1282 = vmatpush1.bf16.msra.mxu0 %v911
    %1283 = vmatprep.subr.bf16.mxu0 %v916
    %1284 = vmatpush1.bf16.msra.mxu0 %v915
    %1285 = vmatprep.subr.bf16.mxu0 %v920
    %1286 = vmatpush1.bf16.msra.mxu0 %v919
    %1287 = vmatprep.subr.bf16.mxu0 %v924
    %1288 = vmatpush1.bf16.msra.mxu0 %v923
    %1289 = vmatprep.subr.bf16.mxu0 %v928
    %1290 = vmatpush1.bf16.msra.mxu0 %v927
    %1291 = vmatprep.subr.bf16.mxu0 %v932
    %1292 = vmatpush1.bf16.msra.mxu0 %v931
    %1293 = vmatprep.subr.bf16.mxu0 %v936
    %1294 = vmatpush1.bf16.msra.mxu0 %v935
    %1295 = vmatprep.subr.bf16.mxu0 %v940
    %1296 = vmatpush1.bf16.msra.mxu0 %v939
    %1297 = vmatprep.subr.bf16.mxu0 %v944
    %1298 = vmatpush1.bf16.msra.mxu0 %v943
    %1299 = vmatprep.mubr.bf16.mxu0 %v88
    %1300 = vmatmul.mubr.bf16.gmra.mrb[0].mxu0 %v87
    %v1301 = vpop.f32.mrb[0].mxu0
    %v1302 = vadd.f32 %v290, %v1301
    %v1303 = vpop.f32.mrb[0].mxu0
    %v1304 = vadd.f32 %v294, %v1303
    %v1305 = vpop.f32.mrb[0].mxu0
    %v1306 = vpop.f32.mrb[0].mxu0
    %1307 = vdwg.mxu0
    %1308 = vmatprep.subr.bf16.mxu0 %v948
    %1309 = vmatpush1.bf16.msra.mxu0 %v947
    %1310 = vmatprep.subr.bf16.mxu0 %v952
    %1311 = vmatpush1.bf16.msra.mxu0 %v951
    %1312 = vmatprep.subr.bf16.mxu0 %v956
    %1313 = vmatpush1.bf16.msra.mxu0 %v955
    %1314 = vmatprep.subr.bf16.mxu0 %v960
    %1315 = vmatpush1.bf16.msra.mxu0 %v959
    %1316 = vmatprep.subr.bf16.mxu0 %v964
    %1317 = vmatpush1.bf16.msra.mxu0 %v963
    %1318 = vmatprep.subr.bf16.mxu0 %v968
    %1319 = vmatpush1.bf16.msra.mxu0 %v967
    %1320 = vmatprep.subr.bf16.mxu0 %v972
    %1321 = vmatpush1.bf16.msra.mxu0 %v971
    %1322 = vmatprep.subr.bf16.mxu0 %v976
    %1323 = vmatpush1.bf16.msra.mxu0 %v975
    %1324 = vmatprep.subr.bf16.mxu0 %v980
    %1325 = vmatpush1.bf16.msra.mxu0 %v979
    %1326 = vmatprep.subr.bf16.mxu0 %v984
    %1327 = vmatpush1.bf16.msra.mxu0 %v983
    %1328 = vmatprep.subr.bf16.mxu0 %v988
    %1329 = vmatpush1.bf16.msra.mxu0 %v987
    %1330 = vmatprep.subr.bf16.mxu0 %v992
    %1331 = vmatpush1.bf16.msra.mxu0 %v991
    %1332 = vmatprep.subr.bf16.mxu0 %v996
    %1333 = vmatpush1.bf16.msra.mxu0 %v995
    %1334 = vmatprep.subr.bf16.mxu0 %v1000
    %1335 = vmatpush1.bf16.msra.mxu0 %v999
    %1336 = vmatprep.subr.bf16.mxu0 %v1004
    %1337 = vmatpush1.bf16.msra.mxu0 %v1003
    %1338 = vmatprep.subr.bf16.mxu0 %v1008
    %1339 = vmatpush1.bf16.msra.mxu0 %v1007
    %1340 = vmatprep.mubr.bf16.mxu0 %v90
    %1341 = vmatmul.mubr.bf16.gmra.mrb[0].mxu0 %v89
    %v1342 = vpop.f32.mrb[0].mxu0
    %v1343 = vadd.f32 %v1302, %v1342
    %v1344 = vpop.f32.mrb[0].mxu0
    %v1345 = vadd.f32 %v1304, %v1344
    %v1346 = vpop.f32.mrb[0].mxu0
    %v1347 = vpop.f32.mrb[0].mxu0
    %1348 = vdwg.mxu0
    %1349 = vmatprep.subr.bf16.mxu0 %v1012
    %1350 = vmatpush1.bf16.msra.mxu0 %v1011
    %1351 = vmatprep.subr.bf16.mxu0 %v1016
    %1352 = vmatpush1.bf16.msra.mxu0 %v1015
    %1353 = vmatprep.subr.bf16.mxu0 %v1020
    %1354 = vmatpush1.bf16.msra.mxu0 %v1019
    %1355 = vmatprep.subr.bf16.mxu0 %v1024
    %1356 = vmatpush1.bf16.msra.mxu0 %v1023
    %1357 = vmatprep.subr.bf16.mxu0 %v1028
    %1358 = vmatpush1.bf16.msra.mxu0 %v1027
    %1359 = vmatprep.subr.bf16.mxu0 %v1032
    %1360 = vmatpush1.bf16.msra.mxu0 %v1031
    %1361 = vmatprep.subr.bf16.mxu0 %v1036
    %1362 = vmatpush1.bf16.msra.mxu0 %v1035
    %1363 = vmatprep.subr.bf16.mxu0 %v1040
    %1364 = vmatpush1.bf16.msra.mxu0 %v1039
    %1365 = vmatprep.subr.bf16.mxu0 %v1044
    %1366 = vmatpush1.bf16.msra.mxu0 %v1043
    %1367 = vmatprep.subr.bf16.mxu0 %v1048
    %1368 = vmatpush1.bf16.msra.mxu0 %v1047
    %1369 = vmatprep.subr.bf16.mxu0 %v1052
    %1370 = vmatpush1.bf16.msra.mxu0 %v1051
    %1371 = vmatprep.subr.bf16.mxu0 %v1056
    %1372 = vmatpush1.bf16.msra.mxu0 %v1055
    %1373 = vmatprep.subr.bf16.mxu0 %v1060
    %1374 = vmatpush1.bf16.msra.mxu0 %v1059
    %1375 = vmatprep.subr.bf16.mxu0 %v1064
    %1376 = vmatpush1.bf16.msra.mxu0 %v1063
    %1377 = vmatprep.subr.bf16.mxu0 %v1068
    %1378 = vmatpush1.bf16.msra.mxu0 %v1067
    %1379 = vmatprep.subr.bf16.mxu0 %v1072
    %1380 = vmatpush1.bf16.msra.mxu0 %v1071
    %1381 = vmatprep.mubr.bf16.mxu0 %v92
    %1382 = vmatmul.mubr.bf16.gmra.mrb[0].mxu0 %v91
    %v1383 = vpop.f32.mrb[0].mxu0
    %v1384 = vadd.f32 %v1343, %v1383
    %v1385 = vpop.f32.mrb[0].mxu0
    %v1386 = vadd.f32 %v1345, %v1385
    %v1387 = vpop.f32.mrb[0].mxu0
    %v1388 = vpop.f32.mrb[0].mxu0
    %1389 = vdwg.mxu0
    %1390 = vmatprep.subr.bf16.mxu0 %v886
    %1391 = vmatpush1.bf16.msra.mxu0 %v885
    %1392 = vmatprep.subr.bf16.mxu0 %v890
    %1393 = vmatpush1.bf16.msra.mxu0 %v889
    %1394 = vmatprep.subr.bf16.mxu0 %v894
    %1395 = vmatpush1.bf16.msra.mxu0 %v893
    %1396 = vmatprep.subr.bf16.mxu0 %v898
    %1397 = vmatpush1.bf16.msra.mxu0 %v897
    %1398 = vmatprep.subr.bf16.mxu0 %v902
    %1399 = vmatpush1.bf16.msra.mxu0 %v901
    %1400 = vmatprep.subr.bf16.mxu0 %v906
    %1401 = vmatpush1.bf16.msra.mxu0 %v905
    %1402 = vmatprep.subr.bf16.mxu0 %v910
    %1403 = vmatpush1.bf16.msra.mxu0 %v909
    %1404 = vmatprep.subr.bf16.mxu0 %v914
    %1405 = vmatpush1.bf16.msra.mxu0 %v913
    %1406 = vmatprep.subr.bf16.mxu0 %v918
    %1407 = vmatpush1.bf16.msra.mxu0 %v917
    %1408 = vmatprep.subr.bf16.mxu0 %v922
    %1409 = vmatpush1.bf16.msra.mxu0 %v921
    %1410 = vmatprep.subr.bf16.mxu0 %v926
    %1411 = vmatpush1.bf16.msra.mxu0 %v925
    %1412 = vmatprep.subr.bf16.mxu0 %v930
    %1413 = vmatpush1.bf16.msra.mxu0 %v929
    %1414 = vmatprep.subr.bf16.mxu0 %v934
    %1415 = vmatpush1.bf16.msra.mxu0 %v933
    %1416 = vmatprep.subr.bf16.mxu0 %v938
    %1417 = vmatpush1.bf16.msra.mxu0 %v937
    %1418 = vmatprep.subr.bf16.mxu0 %v942
    %1419 = vmatpush1.bf16.msra.mxu0 %v941
    %1420 = vmatprep.subr.bf16.mxu0 %v946
    %1421 = vmatpush1.bf16.msra.mxu0 %v945
    %1422 = vmatprep.mubr.bf16.mxu0 %v88
    %1423 = vmatmul.mubr.bf16.gmra.mrb[0].mxu0 %v87
    %v1424 = vpop.f32.mrb[0].mxu0
    %v1425 = vadd.f32 %v298, %v1424
    %v1426 = vpop.f32.mrb[0].mxu0
    %v1427 = vadd.f32 %v302, %v1426
    %v1428 = vpop.f32.mrb[0].mxu0
    %v1429 = vpop.f32.mrb[0].mxu0
    %1430 = vdwg.mxu0
    %1431 = vmatprep.subr.bf16.mxu0 %v950
    %1432 = vmatpush1.bf16.msra.mxu0 %v949
    %1433 = vmatprep.subr.bf16.mxu0 %v954
    %1434 = vmatpush1.bf16.msra.mxu0 %v953
    %1435 = vmatprep.subr.bf16.mxu0 %v958
    %1436 = vmatpush1.bf16.msra.mxu0 %v957
    %1437 = vmatprep.subr.bf16.mxu0 %v962
    %1438 = vmatpush1.bf16.msra.mxu0 %v961
    %1439 = vmatprep.subr.bf16.mxu0 %v966
    %1440 = vmatpush1.bf16.msra.mxu0 %v965
    %1441 = vmatprep.subr.bf16.mxu0 %v970
    %1442 = vmatpush1.bf16.msra.mxu0 %v969
    %1443 = vmatprep.subr.bf16.mxu0 %v974
    %1444 = vmatpush1.bf16.msra.mxu0 %v973
    %1445 = vmatprep.subr.bf16.mxu0 %v978
    %1446 = vmatpush1.bf16.msra.mxu0 %v977
    %1447 = vmatprep.subr.bf16.mxu0 %v982
    %1448 = vmatpush1.bf16.msra.mxu0 %v981
    %1449 = vmatprep.subr.bf16.mxu0 %v986
    %1450 = vmatpush1.bf16.msra.mxu0 %v985
    %1451 = vmatprep.subr.bf16.mxu0 %v990
    %1452 = vmatpush1.bf16.msra.mxu0 %v989
    %1453 = vmatprep.subr.bf16.mxu0 %v994
    %1454 = vmatpush1.bf16.msra.mxu0 %v993
    %1455 = vmatprep.subr.bf16.mxu0 %v998
    %1456 = vmatpush1.bf16.msra.mxu0 %v997
    %1457 = vmatprep.subr.bf16.mxu0 %v1002
    %1458 = vmatpush1.bf16.msra.mxu0 %v1001
    %1459 = vmatprep.subr.bf16.mxu0 %v1006
    %1460 = vmatpush1.bf16.msra.mxu0 %v1005
    %1461 = vmatprep.subr.bf16.mxu0 %v1010
    %1462 = vmatpush1.bf16.msra.mxu0 %v1009
    %1463 = vmatprep.mubr.bf16.mxu0 %v90
    %1464 = vmatmul.mubr.bf16.gmra.mrb[0].mxu0 %v89
    %v1465 = vpop.f32.mrb[0].mxu0
    %v1466 = vadd.f32 %v1425, %v1465
    %v1467 = vpop.f32.mrb[0].mxu0
    %v1468 = vadd.f32 %v1427, %v1467
    %v1469 = vpop.f32.mrb[0].mxu0
    %v1470 = vpop.f32.mrb[0].mxu0
    %1471 = vdwg.mxu0
    %1472 = vmatprep.subr.bf16.mxu0 %v1014
    %1473 = vmatpush1.bf16.msra.mxu0 %v1013
    %1474 = vmatprep.subr.bf16.mxu0 %v1018
    %1475 = vmatpush1.bf16.msra.mxu0 %v1017
    %1476 = vmatprep.subr.bf16.mxu0 %v1022
    %1477 = vmatpush1.bf16.msra.mxu0 %v1021
    %1478 = vmatprep.subr.bf16.mxu0 %v1026
    %1479 = vmatpush1.bf16.msra.mxu0 %v1025
    %1480 = vmatprep.subr.bf16.mxu0 %v1030
    %1481 = vmatpush1.bf16.msra.mxu0 %v1029
    %1482 = vmatprep.subr.bf16.mxu0 %v1034
    %1483 = vmatpush1.bf16.msra.mxu0 %v1033
    %1484 = vmatprep.subr.bf16.mxu0 %v1038
    %1485 = vmatpush1.bf16.msra.mxu0 %v1037
    %1486 = vmatprep.subr.bf16.mxu0 %v1042
    %1487 = vmatpush1.bf16.msra.mxu0 %v1041
    %1488 = vmatprep.subr.bf16.mxu0 %v1046
    %1489 = vmatpush1.bf16.msra.mxu0 %v1045
    %1490 = vmatprep.subr.bf16.mxu0 %v1050
    %1491 = vmatpush1.bf16.msra.mxu0 %v1049
    %1492 = vmatprep.subr.bf16.mxu0 %v1054
    %1493 = vmatpush1.bf16.msra.mxu0 %v1053
    %1494 = vmatprep.subr.bf16.mxu0 %v1058
    %1495 = vmatpush1.bf16.msra.mxu0 %v1057
    %1496 = vmatprep.subr.bf16.mxu0 %v1062
    %1497 = vmatpush1.bf16.msra.mxu0 %v1061
    %1498 = vmatprep.subr.bf16.mxu0 %v1066
    %1499 = vmatpush1.bf16.msra.mxu0 %v1065
    %1500 = vmatprep.subr.bf16.mxu0 %v1070
    %1501 = vmatpush1.bf16.msra.mxu0 %v1069
    %1502 = vmatprep.subr.bf16.mxu0 %v1074
    %1503 = vmatpush1.bf16.msra.mxu0 %v1073
    %1504 = vmatprep.mubr.bf16.mxu0 %v92
    %1505 = vmatmul.mubr.bf16.gmra.mrb[0].mxu0 %v91
    %v1506 = vpop.f32.mrb[0].mxu0
    %v1507 = vadd.f32 %v1466, %v1506
    %v1508 = vpop.f32.mrb[0].mxu0
    %v1509 = vadd.f32 %v1468, %v1508
    %v1510 = vpop.f32.mrb[0].mxu0
    %v1511 = vpop.f32.mrb[0].mxu0
    %1512 = vdwg.mxu0
    %vm1513 = vcmp.gt.f32.partialorder %v1384, 0.0
    %vm1514 = vcmp.gt.f32.partialorder %v1386, 0.0
    %vm1515 = vcmp.gt.f32.partialorder %v1507, 0.0
    %vm1516 = vcmp.gt.f32.partialorder %v1509, 0.0
    %v1517 = vmul.f32 %v1384, 0.01
    %v1518 = vmul.f32 %v1386, 0.01
    %v1519 = vmul.f32 %v1507, 0.01
    %v1520 = vmul.f32 %v1509, 0.01
    %v1521 = vsel %vm1513, %v1384, %v1517
    %v1522 = vsel %vm1514, %v1386, %v1518
    %v1523 = vsel %vm1515, %v1507, %v1519
    %v1524 = vsel %vm1516, %v1509, %v1520
    %v1525 = vpack.c.bf16 %v1521, %v1521
    %v1526 = vpack.c.bf16 %v1522, %v1522
    %v1527 = vpack.c.bf16 %v1523, %v1523
    %v1528 = vpack.c.bf16 %v1524, %v1524
    %v1529 = vld [vmem:[#allocation7] sm:$0xff]
    %v1530 = vld [vmem:[#allocation7 + $0x8] sm:$0xff]
    %v1531 = vld [vmem:[#allocation7 + $0x10] sm:$0xff]
    %v1532 = vld [vmem:[#allocation7 + $0x18] sm:$0xff]
    %v1533 = vld [vmem:[#allocation7 + $0x20] sm:$0xff]
    %v1534 = vld [vmem:[#allocation7 + $0x28] sm:$0xff]
    %v1535 = vld [vmem:[#allocation7 + $0x30] sm:$0xff]
    %v1536 = vld [vmem:[#allocation7 + $0x38] sm:$0xff]
    %v1537 = vld [vmem:[#allocation7 + $0x40] sm:$0xff]
    %v1538 = vld [vmem:[#allocation7 + $0x48] sm:$0xff]
    %v1539 = vld [vmem:[#allocation7 + $0x50] sm:$0xff]
    %v1540 = vld [vmem:[#allocation7 + $0x58] sm:$0xff]
    %v1541 = vld [vmem:[#allocation7 + $0x60] sm:$0xff]
    %v1542 = vld [vmem:[#allocation7 + $0x68] sm:$0xff]
    %v1543 = vld [vmem:[#allocation7 + $0x70] sm:$0xff]
    %v1544 = vld [vmem:[#allocation7 + $0x78] sm:$0xff]
    %v1545 = vld [vmem:[#allocation7 + $0x80] sm:$0xff]
    %v1546 = vld [vmem:[#allocation7 + $0x88] sm:$0xff]
    %v1547 = vld [vmem:[#allocation7 + $0x90] sm:$0xff]
    %v1548 = vld [vmem:[#allocation7 + $0x98] sm:$0xff]
    %v1549 = vld [vmem:[#allocation7 + $0xa0] sm:$0xff]
    %v1550 = vld [vmem:[#allocation7 + $0xa8] sm:$0xff]
    %v1551 = vld [vmem:[#allocation7 + $0xb0] sm:$0xff]
    %v1552 = vld [vmem:[#allocation7 + $0xb8] sm:$0xff]
    %v1553 = vld [vmem:[#allocation7 + $0xc0] sm:$0xff]
    %v1554 = vld [vmem:[#allocation7 + $0xc8] sm:$0xff]
    %v1555 = vld [vmem:[#allocation7 + $0xd0] sm:$0xff]
    %v1556 = vld [vmem:[#allocation7 + $0xd8] sm:$0xff]
    %v1557 = vld [vmem:[#allocation7 + $0xe0] sm:$0xff]
    %v1558 = vld [vmem:[#allocation7 + $0xe8] sm:$0xff]
    %v1559 = vld [vmem:[#allocation7 + $0xf0] sm:$0xff]
    %v1560 = vld [vmem:[#allocation7 + $0xf8] sm:$0xff]
    %v1561 = vld [vmem:[#allocation7 + $0x100] sm:$0xff]
    %v1562 = vld [vmem:[#allocation7 + $0x108] sm:$0xff]
    %v1563 = vld [vmem:[#allocation7 + $0x110] sm:$0xff]
    %v1564 = vld [vmem:[#allocation7 + $0x118] sm:$0xff]
    %v1565 = vld [vmem:[#allocation7 + $0x120] sm:$0xff]
    %v1566 = vld [vmem:[#allocation7 + $0x128] sm:$0xff]
    %v1567 = vld [vmem:[#allocation7 + $0x130] sm:$0xff]
    %v1568 = vld [vmem:[#allocation7 + $0x138] sm:$0xff]
    %v1569 = vld [vmem:[#allocation7 + $0x140] sm:$0xff]
    %v1570 = vld [vmem:[#allocation7 + $0x148] sm:$0xff]
    %v1571 = vld [vmem:[#allocation7 + $0x150] sm:$0xff]
    %v1572 = vld [vmem:[#allocation7 + $0x158] sm:$0xff]
    %v1573 = vld [vmem:[#allocation7 + $0x160] sm:$0xff]
    %v1574 = vld [vmem:[#allocation7 + $0x168] sm:$0xff]
    %v1575 = vld [vmem:[#allocation7 + $0x170] sm:$0xff]
    %v1576 = vld [vmem:[#allocation7 + $0x178] sm:$0xff]
    %v1577 = vld [vmem:[#allocation7 + $0x180] sm:$0xff]
    %v1578 = vld [vmem:[#allocation7 + $0x188] sm:$0xff]
    %v1579 = vld [vmem:[#allocation7 + $0x190] sm:$0xff]
    %v1580 = vld [vmem:[#allocation7 + $0x198] sm:$0xff]
    %v1581 = vld [vmem:[#allocation7 + $0x1a0] sm:$0xff]
    %v1582 = vld [vmem:[#allocation7 + $0x1a8] sm:$0xff]
    %v1583 = vld [vmem:[#allocation7 + $0x1b0] sm:$0xff]
    %v1584 = vld [vmem:[#allocation7 + $0x1b8] sm:$0xff]
    %v1585 = vld [vmem:[#allocation7 + $0x1c0] sm:$0xff]
    %v1586 = vld [vmem:[#allocation7 + $0x1c8] sm:$0xff]
    %v1587 = vld [vmem:[#allocation7 + $0x1d0] sm:$0xff]
    %v1588 = vld [vmem:[#allocation7 + $0x1d8] sm:$0xff]
    %v1589 = vld [vmem:[#allocation7 + $0x1e0] sm:$0xff]
    %v1590 = vld [vmem:[#allocation7 + $0x1e8] sm:$0xff]
    %v1591 = vld [vmem:[#allocation7 + $0x1f0] sm:$0xff]
    %v1592 = vld [vmem:[#allocation7 + $0x1f8] sm:$0xff]
    %v1593 = vld [vmem:[%s4] sm:$0x3]
    %v1595 = vlaneseq
    %v1596 = vshrl.u32 %v1595, 7
    %v1597 = vsub.s32 0, %v1596
    %v1598 = vrot.slane %v1593, %v1597
    %v1599 = vlaneseq
    %v1600 = vshrl.u32 %v1599, 7
    %v1601 = vsub.s32 1, %v1600
    %v1602 = vrot.slane %v1593, %v1601
    %v1669 = vunpack.c.l.b16 %v1529
    %v1670 = vunpack.c.h.b16 %v1529
    %v1671 = vunpack.c.l.b16 %v1530
    %v1672 = vunpack.c.h.b16 %v1530
    %v1673 = vunpack.c.l.b16 %v1531
    %v1674 = vunpack.c.h.b16 %v1531
    %v1675 = vunpack.c.l.b16 %v1532
    %v1676 = vunpack.c.h.b16 %v1532
    %v1677 = vunpack.c.l.b16 %v1533
    %v1678 = vunpack.c.h.b16 %v1533
    %v1679 = vunpack.c.l.b16 %v1534
    %v1680 = vunpack.c.h.b16 %v1534
    %v1681 = vunpack.c.l.b16 %v1535
    %v1682 = vunpack.c.h.b16 %v1535
    %v1683 = vunpack.c.l.b16 %v1536
    %v1684 = vunpack.c.h.b16 %v1536
    %v1685 = vunpack.c.l.b16 %v1537
    %v1686 = vunpack.c.h.b16 %v1537
    %v1687 = vunpack.c.l.b16 %v1538
    %v1688 = vunpack.c.h.b16 %v1538
    %v1689 = vunpack.c.l.b16 %v1539
    %v1690 = vunpack.c.h.b16 %v1539
    %v1691 = vunpack.c.l.b16 %v1540
    %v1692 = vunpack.c.h.b16 %v1540
    %v1693 = vunpack.c.l.b16 %v1541
    %v1694 = vunpack.c.h.b16 %v1541
    %v1695 = vunpack.c.l.b16 %v1542
    %v1696 = vunpack.c.h.b16 %v1542
    %v1697 = vunpack.c.l.b16 %v1543
    %v1698 = vunpack.c.h.b16 %v1543
    %v1699 = vunpack.c.l.b16 %v1544
    %v1700 = vunpack.c.h.b16 %v1544
    %v1701 = vunpack.c.l.b16 %v1545
    %v1702 = vunpack.c.h.b16 %v1545
    %v1703 = vunpack.c.l.b16 %v1546
    %v1704 = vunpack.c.h.b16 %v1546
    %v1705 = vunpack.c.l.b16 %v1547
    %v1706 = vunpack.c.h.b16 %v1547
    %v1707 = vunpack.c.l.b16 %v1548
    %v1708 = vunpack.c.h.b16 %v1548
    %v1709 = vunpack.c.l.b16 %v1549
    %v1710 = vunpack.c.h.b16 %v1549
    %v1711 = vunpack.c.l.b16 %v1550
    %v1712 = vunpack.c.h.b16 %v1550
    %v1713 = vunpack.c.l.b16 %v1551
    %v1714 = vunpack.c.h.b16 %v1551
    %v1715 = vunpack.c.l.b16 %v1552
    %v1716 = vunpack.c.h.b16 %v1552
    %v1717 = vunpack.c.l.b16 %v1553
    %v1718 = vunpack.c.h.b16 %v1553
    %v1719 = vunpack.c.l.b16 %v1554
    %v1720 = vunpack.c.h.b16 %v1554
    %v1721 = vunpack.c.l.b16 %v1555
    %v1722 = vunpack.c.h.b16 %v1555
    %v1723 = vunpack.c.l.b16 %v1556
    %v1724 = vunpack.c.h.b16 %v1556
    %v1725 = vunpack.c.l.b16 %v1557
    %v1726 = vunpack.c.h.b16 %v1557
    %v1727 = vunpack.c.l.b16 %v1558
    %v1728 = vunpack.c.h.b16 %v1558
    %v1729 = vunpack.c.l.b16 %v1559
    %v1730 = vunpack.c.h.b16 %v1559
    %v1731 = vunpack.c.l.b16 %v1560
    %v1732 = vunpack.c.h.b16 %v1560
    %v1733 = vunpack.c.l.b16 %v1561
    %v1734 = vunpack.c.h.b16 %v1561
    %v1735 = vunpack.c.l.b16 %v1562
    %v1736 = vunpack.c.h.b16 %v1562
    %v1737 = vunpack.c.l.b16 %v1563
    %v1738 = vunpack.c.h.b16 %v1563
    %v1739 = vunpack.c.l.b16 %v1564
    %v1740 = vunpack.c.h.b16 %v1564
    %v1741 = vunpack.c.l.b16 %v1565
    %v1742 = vunpack.c.h.b16 %v1565
    %v1743 = vunpack.c.l.b16 %v1566
    %v1744 = vunpack.c.h.b16 %v1566
    %v1745 = vunpack.c.l.b16 %v1567
    %v1746 = vunpack.c.h.b16 %v1567
    %v1747 = vunpack.c.l.b16 %v1568
    %v1748 = vunpack.c.h.b16 %v1568
    %v1749 = vunpack.c.l.b16 %v1569
    %v1750 = vunpack.c.h.b16 %v1569
    %v1751 = vunpack.c.l.b16 %v1570
    %v1752 = vunpack.c.h.b16 %v1570
    %v1753 = vunpack.c.l.b16 %v1571
    %v1754 = vunpack.c.h.b16 %v1571
    %v1755 = vunpack.c.l.b16 %v1572
    %v1756 = vunpack.c.h.b16 %v1572
    %v1757 = vunpack.c.l.b16 %v1573
    %v1758 = vunpack.c.h.b16 %v1573
    %v1759 = vunpack.c.l.b16 %v1574
    %v1760 = vunpack.c.h.b16 %v1574
    %v1761 = vunpack.c.l.b16 %v1575
    %v1762 = vunpack.c.h.b16 %v1575
    %v1763 = vunpack.c.l.b16 %v1576
    %v1764 = vunpack.c.h.b16 %v1576
    %v1765 = vunpack.c.l.b16 %v1577
    %v1766 = vunpack.c.h.b16 %v1577
    %v1767 = vunpack.c.l.b16 %v1578
    %v1768 = vunpack.c.h.b16 %v1578
    %v1769 = vunpack.c.l.b16 %v1579
    %v1770 = vunpack.c.h.b16 %v1579
    %v1771 = vunpack.c.l.b16 %v1580
    %v1772 = vunpack.c.h.b16 %v1580
    %v1773 = vunpack.c.l.b16 %v1581
    %v1774 = vunpack.c.h.b16 %v1581
    %v1775 = vunpack.c.l.b16 %v1582
    %v1776 = vunpack.c.h.b16 %v1582
    %v1777 = vunpack.c.l.b16 %v1583
    %v1778 = vunpack.c.h.b16 %v1583
    %v1779 = vunpack.c.l.b16 %v1584
    %v1780 = vunpack.c.h.b16 %v1584
    %v1781 = vunpack.c.l.b16 %v1585
    %v1782 = vunpack.c.h.b16 %v1585
    %v1783 = vunpack.c.l.b16 %v1586
    %v1784 = vunpack.c.h.b16 %v1586
    %v1785 = vunpack.c.l.b16 %v1587
    %v1786 = vunpack.c.h.b16 %v1587
    %v1787 = vunpack.c.l.b16 %v1588
    %v1788 = vunpack.c.h.b16 %v1588
    %v1789 = vunpack.c.l.b16 %v1589
    %v1790 = vunpack.c.h.b16 %v1589
    %v1791 = vunpack.c.l.b16 %v1590
    %v1792 = vunpack.c.h.b16 %v1590
    %v1793 = vunpack.c.l.b16 %v1591
    %v1794 = vunpack.c.h.b16 %v1591
    %v1795 = vunpack.c.l.b16 %v1592
    %v1796 = vunpack.c.h.b16 %v1592
    %v1797 = vpack.c.b16 %v1671, %v1669
    %v1798 = vpack.c.b16 %v1672, %v1670
    %v1799 = vpack.c.b16 %v1675, %v1673
    %v1800 = vpack.c.b16 %v1676, %v1674
    %v1801 = vpack.c.b16 %v1679, %v1677
    %v1802 = vpack.c.b16 %v1680, %v1678
    %v1803 = vpack.c.b16 %v1683, %v1681
    %v1804 = vpack.c.b16 %v1684, %v1682
    %v1805 = vpack.c.b16 %v1687, %v1685
    %v1806 = vpack.c.b16 %v1688, %v1686
    %v1807 = vpack.c.b16 %v1691, %v1689
    %v1808 = vpack.c.b16 %v1692, %v1690
    %v1809 = vpack.c.b16 %v1695, %v1693
    %v1810 = vpack.c.b16 %v1696, %v1694
    %v1811 = vpack.c.b16 %v1699, %v1697
    %v1812 = vpack.c.b16 %v1700, %v1698
    %v1813 = vpack.c.b16 %v1703, %v1701
    %v1814 = vpack.c.b16 %v1704, %v1702
    %v1815 = vpack.c.b16 %v1707, %v1705
    %v1816 = vpack.c.b16 %v1708, %v1706
    %v1817 = vpack.c.b16 %v1711, %v1709
    %v1818 = vpack.c.b16 %v1712, %v1710
    %v1819 = vpack.c.b16 %v1715, %v1713
    %v1820 = vpack.c.b16 %v1716, %v1714
    %v1821 = vpack.c.b16 %v1719, %v1717
    %v1822 = vpack.c.b16 %v1720, %v1718
    %v1823 = vpack.c.b16 %v1723, %v1721
    %v1824 = vpack.c.b16 %v1724, %v1722
    %v1825 = vpack.c.b16 %v1727, %v1725
    %v1826 = vpack.c.b16 %v1728, %v1726
    %v1827 = vpack.c.b16 %v1731, %v1729
    %v1828 = vpack.c.b16 %v1732, %v1730
    %v1829 = vpack.c.b16 %v1735, %v1733
    %v1830 = vpack.c.b16 %v1736, %v1734
    %v1831 = vpack.c.b16 %v1739, %v1737
    %v1832 = vpack.c.b16 %v1740, %v1738
    %v1833 = vpack.c.b16 %v1743, %v1741
    %v1834 = vpack.c.b16 %v1744, %v1742
    %v1835 = vpack.c.b16 %v1747, %v1745
    %v1836 = vpack.c.b16 %v1748, %v1746
    %v1837 = vpack.c.b16 %v1751, %v1749
    %v1838 = vpack.c.b16 %v1752, %v1750
    %v1839 = vpack.c.b16 %v1755, %v1753
    %v1840 = vpack.c.b16 %v1756, %v1754
    %v1841 = vpack.c.b16 %v1759, %v1757
    %v1842 = vpack.c.b16 %v1760, %v1758
    %v1843 = vpack.c.b16 %v1763, %v1761
    %v1844 = vpack.c.b16 %v1764, %v1762
    %v1845 = vpack.c.b16 %v1767, %v1765
    %v1846 = vpack.c.b16 %v1768, %v1766
    %v1847 = vpack.c.b16 %v1771, %v1769
    %v1848 = vpack.c.b16 %v1772, %v1770
    %v1849 = vpack.c.b16 %v1775, %v1773
    %v1850 = vpack.c.b16 %v1776, %v1774
    %v1851 = vpack.c.b16 %v1779, %v1777
    %v1852 = vpack.c.b16 %v1780, %v1778
    %v1853 = vpack.c.b16 %v1783, %v1781
    %v1854 = vpack.c.b16 %v1784, %v1782
    %v1855 = vpack.c.b16 %v1787, %v1785
    %v1856 = vpack.c.b16 %v1788, %v1786
    %v1857 = vpack.c.b16 %v1791, %v1789
    %v1858 = vpack.c.b16 %v1792, %v1790
    %v1859 = vpack.c.b16 %v1795, %v1793
    %v1860 = vpack.c.b16 %v1796, %v1794
    %1925 = vmatprep.subr.bf16.mxu0 %v1798
    %1926 = vmatpush1.bf16.msra.mxu0 %v1797
    %1927 = vmatprep.subr.bf16.mxu0 %v1800
    %1928 = vmatpush1.bf16.msra.mxu0 %v1799
    %1929 = vmatprep.subr.bf16.mxu0 %v1802
    %1930 = vmatpush1.bf16.msra.mxu0 %v1801
    %1931 = vmatprep.subr.bf16.mxu0 %v1804
    %1932 = vmatpush1.bf16.msra.mxu0 %v1803
    %1933 = vmatprep.subr.bf16.mxu0 %v1806
    %1934 = vmatpush1.bf16.msra.mxu0 %v1805
    %1935 = vmatprep.subr.bf16.mxu0 %v1808
    %1936 = vmatpush1.bf16.msra.mxu0 %v1807
    %1937 = vmatprep.subr.bf16.mxu0 %v1810
    %1938 = vmatpush1.bf16.msra.mxu0 %v1809
    %1939 = vmatprep.subr.bf16.mxu0 %v1812
    %1940 = vmatpush1.bf16.msra.mxu0 %v1811
    %1941 = vmatprep.subr.bf16.mxu0 %v1814
    %1942 = vmatpush1.bf16.msra.mxu0 %v1813
    %1943 = vmatprep.subr.bf16.mxu0 %v1816
    %1944 = vmatpush1.bf16.msra.mxu0 %v1815
    %1945 = vmatprep.subr.bf16.mxu0 %v1818
    %1946 = vmatpush1.bf16.msra.mxu0 %v1817
    %1947 = vmatprep.subr.bf16.mxu0 %v1820
    %1948 = vmatpush1.bf16.msra.mxu0 %v1819
    %1949 = vmatprep.subr.bf16.mxu0 %v1822
    %1950 = vmatpush1.bf16.msra.mxu0 %v1821
    %1951 = vmatprep.subr.bf16.mxu0 %v1824
    %1952 = vmatpush1.bf16.msra.mxu0 %v1823
    %1953 = vmatprep.subr.bf16.mxu0 %v1826
    %1954 = vmatpush1.bf16.msra.mxu0 %v1825
    %1955 = vmatprep.subr.bf16.mxu0 %v1828
    %1956 = vmatpush1.bf16.msra.mxu0 %v1827
    %1957 = vmatprep.mubr.bf16.mxu0 %v1526
    %1958 = vmatmul.mubr.bf16.gmra.mrb[0].mxu0 %v1525
    %v1959 = vpop.f32.mrb[0].mxu0
    %v1960 = vadd.f32 %v1598, %v1959
    %v1961 = vpop.f32.mrb[0].mxu0
    %v1962 = vadd.f32 %v1602, %v1961
    %v1963 = vpop.f32.mrb[0].mxu0
    %v1964 = vpop.f32.mrb[0].mxu0
    %1965 = vdwg.mxu0
    %1966 = vmatprep.subr.bf16.mxu0 %v1830
    %1967 = vmatpush1.bf16.msra.mxu0 %v1829
    %1968 = vmatprep.subr.bf16.mxu0 %v1832
    %1969 = vmatpush1.bf16.msra.mxu0 %v1831
    %1970 = vmatprep.subr.bf16.mxu0 %v1834
    %1971 = vmatpush1.bf16.msra.mxu0 %v1833
    %1972 = vmatprep.subr.bf16.mxu0 %v1836
    %1973 = vmatpush1.bf16.msra.mxu0 %v1835
    %1974 = vmatprep.subr.bf16.mxu0 %v1838
    %1975 = vmatpush1.bf16.msra.mxu0 %v1837
    %1976 = vmatprep.subr.bf16.mxu0 %v1840
    %1977 = vmatpush1.bf16.msra.mxu0 %v1839
    %1978 = vmatprep.subr.bf16.mxu0 %v1842
    %1979 = vmatpush1.bf16.msra.mxu0 %v1841
    %1980 = vmatprep.subr.bf16.mxu0 %v1844
    %1981 = vmatpush1.bf16.msra.mxu0 %v1843
    %1982 = vmatprep.subr.bf16.mxu0 %v1846
    %1983 = vmatpush1.bf16.msra.mxu0 %v1845
    %1984 = vmatprep.subr.bf16.mxu0 %v1848
    %1985 = vmatpush1.bf16.msra.mxu0 %v1847
    %1986 = vmatprep.subr.bf16.mxu0 %v1850
    %1987 = vmatpush1.bf16.msra.mxu0 %v1849
    %1988 = vmatprep.subr.bf16.mxu0 %v1852
    %1989 = vmatpush1.bf16.msra.mxu0 %v1851
    %1990 = vmatprep.subr.bf16.mxu0 %v1854
    %1991 = vmatpush1.bf16.msra.mxu0 %v1853
    %1992 = vmatprep.subr.bf16.mxu0 %v1856
    %1993 = vmatpush1.bf16.msra.mxu0 %v1855
    %1994 = vmatprep.subr.bf16.mxu0 %v1858
    %1995 = vmatpush1.bf16.msra.mxu0 %v1857
    %1996 = vmatprep.subr.bf16.mxu0 %v1860
    %1997 = vmatpush1.bf16.msra.mxu0 %v1859
    %1998 = vmatprep.mubr.bf16.mxu0 %v1528
    %1999 = vmatmul.mubr.bf16.gmra.mrb[0].mxu0 %v1527
    %v2000 = vpop.f32.mrb[0].mxu0
    %v2001 = vadd.f32 %v1960, %v2000
    %v2002 = vpop.f32.mrb[0].mxu0
    %v2003 = vadd.f32 %v1962, %v2002
    %v2004 = vpop.f32.mrb[0].mxu0
    %v2005 = vpop.f32.mrb[0].mxu0
    %2006 = vdwg.mxu0
    %vm2007 = vcmp.gt.f32.partialorder %v2001, 0.0
    %vm2008 = vcmp.gt.f32.partialorder %v2003, 0.0
    %v2009 = vmul.f32 %v2001, 0.01
    %v2010 = vmul.f32 %v2003, 0.01
    %v2011 = vsel %vm2007, %v2001, %v2009
    %v2012 = vsel %vm2008, %v2003, %v2010
    %v2013 = vpack.c.bf16 %v2011, %v2011
    %v2014 = vpack.c.bf16 %v2012, %v2012
    %v2015 = vld [vmem:[#allocation8] sm:$0xf]
    %v2016 = vld [vmem:[#allocation8 + $0x4] sm:$0xf]
    %v2017 = vld [vmem:[#allocation8 + $0x8] sm:$0xf]
    %v2018 = vld [vmem:[#allocation8 + $0xc] sm:$0xf]
    %v2019 = vld [vmem:[#allocation8 + $0x10] sm:$0xf]
    %v2020 = vld [vmem:[#allocation8 + $0x14] sm:$0xf]
    %v2021 = vld [vmem:[#allocation8 + $0x18] sm:$0xf]
    %v2022 = vld [vmem:[#allocation8 + $0x1c] sm:$0xf]
    %v2023 = vld [vmem:[#allocation8 + $0x20] sm:$0xf]
    %v2024 = vld [vmem:[#allocation8 + $0x24] sm:$0xf]
    %v2025 = vld [vmem:[#allocation8 + $0x28] sm:$0xf]
    %v2026 = vld [vmem:[#allocation8 + $0x2c] sm:$0xf]
    %v2027 = vld [vmem:[#allocation8 + $0x30] sm:$0xf]
    %v2028 = vld [vmem:[#allocation8 + $0x34] sm:$0xf]
    %v2029 = vld [vmem:[#allocation8 + $0x38] sm:$0xf]
    %v2030 = vld [vmem:[#allocation8 + $0x3c] sm:$0xf]
    %v2031 = vld [vmem:[#allocation8 + $0x40] sm:$0xf]
    %v2032 = vld [vmem:[#allocation8 + $0x44] sm:$0xf]
    %v2033 = vld [vmem:[#allocation8 + $0x48] sm:$0xf]
    %v2034 = vld [vmem:[#allocation8 + $0x4c] sm:$0xf]
    %v2035 = vld [vmem:[#allocation8 + $0x50] sm:$0xf]
    %v2036 = vld [vmem:[#allocation8 + $0x54] sm:$0xf]
    %v2037 = vld [vmem:[#allocation8 + $0x58] sm:$0xf]
    %v2038 = vld [vmem:[#allocation8 + $0x5c] sm:$0xf]
    %v2039 = vld [vmem:[#allocation8 + $0x60] sm:$0xf]
    %v2040 = vld [vmem:[#allocation8 + $0x64] sm:$0xf]
    %v2041 = vld [vmem:[#allocation8 + $0x68] sm:$0xf]
    %v2042 = vld [vmem:[#allocation8 + $0x6c] sm:$0xf]
    %v2043 = vld [vmem:[#allocation8 + $0x70] sm:$0xf]
    %v2044 = vld [vmem:[#allocation8 + $0x74] sm:$0xf]
    %v2045 = vld [vmem:[#allocation8 + $0x78] sm:$0xf]
    %v2046 = vld [vmem:[#allocation8 + $0x7c] sm:$0xf]
    %v2047 = vld [vmem:[%s6] sm:$0x1]
    %v2049 = vlaneseq
    %v2050 = vshrl.u32 %v2049, 7
    %v2051 = vsub.s32 0, %v2050
    %v2052 = vrot.slane %v2047, %v2051
    %v2086 = vunpack.c.l.b16 %v2015
    %v2087 = vunpack.c.l.b16 %v2016
    %v2088 = vunpack.c.l.b16 %v2017
    %v2089 = vunpack.c.l.b16 %v2018
    %v2090 = vunpack.c.l.b16 %v2019
    %v2091 = vunpack.c.l.b16 %v2020
    %v2092 = vunpack.c.l.b16 %v2021
    %v2093 = vunpack.c.l.b16 %v2022
    %v2094 = vunpack.c.l.b16 %v2023
    %v2095 = vunpack.c.l.b16 %v2024
    %v2096 = vunpack.c.l.b16 %v2025
    %v2097 = vunpack.c.l.b16 %v2026
    %v2098 = vunpack.c.l.b16 %v2027
    %v2099 = vunpack.c.l.b16 %v2028
    %v2100 = vunpack.c.l.b16 %v2029
    %v2101 = vunpack.c.l.b16 %v2030
    %v2102 = vunpack.c.l.b16 %v2031
    %v2103 = vunpack.c.l.b16 %v2032
    %v2104 = vunpack.c.l.b16 %v2033
    %v2105 = vunpack.c.l.b16 %v2034
    %v2106 = vunpack.c.l.b16 %v2035
    %v2107 = vunpack.c.l.b16 %v2036
    %v2108 = vunpack.c.l.b16 %v2037
    %v2109 = vunpack.c.l.b16 %v2038
    %v2110 = vunpack.c.l.b16 %v2039
    %v2111 = vunpack.c.l.b16 %v2040
    %v2112 = vunpack.c.l.b16 %v2041
    %v2113 = vunpack.c.l.b16 %v2042
    %v2114 = vunpack.c.l.b16 %v2043
    %v2115 = vunpack.c.l.b16 %v2044
    %v2116 = vunpack.c.l.b16 %v2045
    %v2117 = vunpack.c.l.b16 %v2046
    %v2118 = vpack.c.b16 %v2087, %v2086
    %v2119 = vpack.c.b16 %v2089, %v2088
    %v2120 = vpack.c.b16 %v2091, %v2090
    %v2121 = vpack.c.b16 %v2093, %v2092
    %v2122 = vpack.c.b16 %v2095, %v2094
    %v2123 = vpack.c.b16 %v2097, %v2096
    %v2124 = vpack.c.b16 %v2099, %v2098
    %v2125 = vpack.c.b16 %v2101, %v2100
    %v2126 = vpack.c.b16 %v2103, %v2102
    %v2127 = vpack.c.b16 %v2105, %v2104
    %v2128 = vpack.c.b16 %v2107, %v2106
    %v2129 = vpack.c.b16 %v2109, %v2108
    %v2130 = vpack.c.b16 %v2111, %v2110
    %v2131 = vpack.c.b16 %v2113, %v2112
    %v2132 = vpack.c.b16 %v2115, %v2114
    %v2133 = vpack.c.b16 %v2117, %v2116
    %2150 = vmatprep.subr.bf16.mxu0 0
    %2151 = vmatpush1.bf16.msra.mxu0 %v2118
    %2152 = vmatprep.subr.bf16.mxu0 0
    %2153 = vmatpush1.bf16.msra.mxu0 %v2119
    %2154 = vmatprep.subr.bf16.mxu0 0
    %2155 = vmatpush1.bf16.msra.mxu0 %v2120
    %2156 = vmatprep.subr.bf16.mxu0 0
    %2157 = vmatpush1.bf16.msra.mxu0 %v2121
    %2158 = vmatprep.subr.bf16.mxu0 0
    %2159 = vmatpush1.bf16.msra.mxu0 %v2122
    %2160 = vmatprep.subr.bf16.mxu0 0
    %2161 = vmatpush1.bf16.msra.mxu0 %v2123
    %2162 = vmatprep.subr.bf16.mxu0 0
    %2163 = vmatpush1.bf16.msra.mxu0 %v2124
    %2164 = vmatprep.subr.bf16.mxu0 0
    %2165 = vmatpush1.bf16.msra.mxu0 %v2125
    %2166 = vmatprep.subr.bf16.mxu0 0
    %2167 = vmatpush1.bf16.msra.mxu0 %v2126
    %2168 = vmatprep.subr.bf16.mxu0 0
    %2169 = vmatpush1.bf16.msra.mxu0 %v2127
    %2170 = vmatprep.subr.bf16.mxu0 0
    %2171 = vmatpush1.bf16.msra.mxu0 %v2128
    %2172 = vmatprep.subr.bf16.mxu0 0
    %2173 = vmatpush1.bf16.msra.mxu0 %v2129
    %2174 = vmatprep.subr.bf16.mxu0 0
    %2175 = vmatpush1.bf16.msra.mxu0 %v2130
    %2176 = vmatprep.subr.bf16.mxu0 0
    %2177 = vmatpush1.bf16.msra.mxu0 %v2131
    %2178 = vmatprep.subr.bf16.mxu0 0
    %2179 = vmatpush1.bf16.msra.mxu0 %v2132
    %2180 = vmatprep.subr.bf16.mxu0 0
    %2181 = vmatpush1.bf16.msra.mxu0 %v2133
    %2182 = vmatprep.mubr.bf16.mxu0 %v2014
    %2183 = vmatmul.mubr.bf16.gmra.mrb[0].mxu0 %v2013
    %v2184 = vpop.f32.mrb[0].mxu0
    %v2185 = vadd.f32 %v2052, %v2184
    %v2186 = vpop.f32.mrb[0].mxu0
    %v2187 = vpop.f32.mrb[0].mxu0
    %v2188 = vpop.f32.mrb[0].mxu0
    %2189 = vdwg.mxu0
    %2190 = vmax.xlane.f32.xlu0 %v2185
    %v2191 = vpop.xlane.xlu0 %2190
    %v2192 = vsub.f32 %v2185, %v2191
    %v2193 = vmul.f32 %v2192, 1.442695
    %v2194 = vpow.pop %v2193
    %2195 = vadd.xlane.f32.xlu0 %v2194
    %v2196 = vpop.xlane.xlu0 %2195
    %v2197 = vlog2.pop %v2196
    %v2198 = vmul.f32 %v2197, 0.6931472
    %v2199 = vsub.f32 %v2192, %v2198
    %2200 = vst [vmem:[#allocation10] sm:$0xff] %v2199
    // Predicated region
    $region46: #{tpu_custom_call.1} parent=1 // pred_check
      _
    $region47: #{tpu_custom_call.1} parent=1 // pred_check_branch
      %2202 = sbr.rel (0) target = $region49
    $region48: #{tpu_custom_call.1} parent=1 // pred_region
      %s2204 = ssub.s32 128, 128
      %2205 = vsyncadd [#allocation4], %s2204
      %s2207 = sshll.u32 [#allocation10], 4
      %s2208 = int_to_ptr.vmem [resolvable:$true] %s2207
      %2210 = dma.vmem_to_hbm [thread:$0]  %s2208, 128, %s7, [#allocation4]
    $region49: #{tpu_custom_call.1} parent=1 // pred_fallthru
      _
    // Predicated region
    $region50: #{tpu_custom_call.1} parent=1 // pred_check
      _
    $region51: #{tpu_custom_call.1} parent=1 // pred_check_branch
      %2212 = sbr.rel (0) target = $region53
    $region52: #{tpu_custom_call.1} parent=1 // pred_region
      %2213 = dma.done [#allocation4], 128
    $region53: #{tpu_custom_call.1} parent=1 // pred_fallthru
      _
    %2214 = vsyncpa [#allocation3], 1
    %2215 = vsyncpa [#allocation6], 1
    %2216 = vsyncpa [#allocation9], 1
    %2217 = vsyncpa [#allocation4], 1

</llo_original>
